<compile_context>
chip_gen: v7x
topology: tpu7x:2x2x1
jax: 0.10.0
libtpu: 0.0.40
codegen_flags: <defaults>
</compile_context>

<pallas_src>
import math

import jax
import jax.numpy as jnp
from jax import lax
from jax.experimental import pallas as pl
from jax.experimental.pallas import tpu as pltpu

TAU = 12       # temporal pooling window (TP default)
BETA = 0.5     # TP blend factor
GROUP = 8      # GRU steps per statically-unrolled group (one f32 vreg of sublanes)
QPAD = 1.0e30  # padding for the causal-min window (plays the role of the -inf pad in TP)


def _round_up(x, m):
    return ((x + m - 1) // m) * m


def tivqa_kernel(len_ref,        # SMEM (1,) int32  -- valid sequence length L (scalar prefetch)
                 feat_ref,       # VMEM (TCHUNK, Din)  -- streamed spatial features
                 wfold_ref,      # VMEM (Din, 3H)      -- fc0 folded into GRU input weights
                 bfold_ref,      # VMEM (1, 3H)        -- folded biases (b_hr/b_hz included)
                 whh_ref,        # VMEM (H, 3H)        -- fused recurrent weight (pre-T, r|z|n)
                 bhhn3_ref,      # VMEM (1, 3H)        -- [0, 0, b_hn]
                 wq_ref,         # VMEM (1, H)         -- q head weight (row)
                 bq_ref,         # VMEM (1, 1)         -- q head bias
                 invlen_ref,     # VMEM (1, 1)         -- 1 / L
                 score_ref,      # VMEM (1, 1) out
                 xg3_ref,        # VMEM scratch (TCHUNK, 3H) -- input-side gate preactivations
                 hblk_ref,       # VMEM scratch (GROUP, H)   -- per-group hidden-state stash
                 h_ref,          # VMEM scratch (1, H)       -- hidden state carried across chunks
                 qrow_ref):      # VMEM scratch (1, W)       -- lane-dense per-frame q, carried
    TCHUNK = feat_ref.shape[0]
    H = wq_ref.shape[1]
    W = qrow_ref.shape[1]
    chunk = pl.program_id(0)
    n_chunks = pl.num_programs(0)

    @pl.when(chunk == 0)
    def _():
        h_ref[...] = jnp.zeros_like(h_ref)
        qrow_ref[...] = jnp.zeros_like(qrow_ref)

    # ---- ANN.fc0 + GRU input projection: one folded MXU pass per streamed chunk --------
    xg3_ref[...] = (
        jnp.dot(feat_ref[...], wfold_ref[...], preferred_element_type=jnp.float32)
        + bfold_ref[...])

    # ---- hoisted loop invariants --------------------------------------------------------
    # TODO(synk): for H >= 128 keep the fused weight in VMEM inside the loop instead of
    # hoisting it into registers (vreg pressure / spills on the serial recurrence path),
    # and consider pltpu.matmul_push_rhs to keep it MXU-stationary on v7x.
    whh = whh_ref[...]           # (H, 3H) fused recurrent weight
    bhh_n3 = bhhn3_ref[...]      # (1, 3H)
    wq = wq_ref[...]             # (1, H)
    bq = bq_ref[...]             # (1, 1)

    lane2 = lax.broadcasted_iota(jnp.int32, (GROUP, W), 1)
    sub2 = lax.broadcasted_iota(jnp.int32, (GROUP, W), 0)
    lane_ms = lane2 - sub2                          # lane index minus within-group step
    chunk_base = chunk * TCHUNK

    n_groups = TCHUNK // GROUP

    # ---- GRU recurrence: grouped, statically unrolled, fused (H,3H) matmul per step ----
    def group_step(g, carry):
        h, q_row = carry
        base = pl.multiple_of(g * GROUP, GROUP)
        blk = xg3_ref[pl.ds(base, GROUP), :]        # one (8, 3H) grouped load
        xrz_blk = blk[:, 0:2 * H]                   # per-gate lane slices, once per group
        xn_blk = blk[:, 2 * H:3 * H]
        for k in range(GROUP):                      # statically unrolled 8 steps
            xrz = xrz_blk[k:k + 1, :]               # static sublane slices (1, 2H)/(1, H)
            xn = xn_blk[k:k + 1, :]
            # single fused recurrent matmul; b_hn appended via the [0,0,b_hn] bias
            hg = jnp.dot(h, whh, preferred_element_type=jnp.float32) + bhh_n3   # (1, 3H)
            rz = jax.nn.sigmoid(xrz + hg[:, 0:2 * H])        # b_i*/b_h* already folded in xrz
            r = rz[:, 0:H]
            z = rz[:, H:2 * H]
            n = jnp.tanh(xn + r * hg[:, 2 * H:3 * H])        # PyTorch GRU: r * (W_hn h + b_hn)
            h = (1.0 - z) * n + z * h
            hblk_ref[k:k + 1, :] = h                # stash row (static index, off crit. path)
        # ---- q head, batched per group: one reduce + one masked q-row update ----------
        h_blk = hblk_ref[...]                                        # (GROUP, H)
        q_blk = jnp.sum(h_blk * wq, axis=1, keepdims=True) + bq      # (GROUP, 1)
        mask = lane_ms == (chunk_base + base)                        # (GROUP, W)
        q_row = q_row + jnp.sum(jnp.where(mask, q_blk, 0.0), axis=0, keepdims=True)
        return h, q_row

    h0 = h_ref[...]
    q0 = qrow_ref[...]
    h_out, q_row = lax.fori_loop(0, n_groups, group_step, (h0, q0))
    h_ref[...] = h_out
    qrow_ref[...] = q_row

    # ---- subjective temporal pooling (last chunk only): lane-dense sliding windows -----
    @pl.when(chunk == n_chunks - 1)
    def _():
        L = len_ref[0]
        lane1 = lax.broadcasted_iota(jnp.int32, (1, W), 1)
        valid = lane1 < L
        q_min_src = jnp.where(valid, q_row, QPAD)      # garbage / padded frames -> QPAD
        q_safe = jnp.where(valid, q_row, 0.0)          # sanitize before exp
        e = jnp.exp(-q_safe)

        # pack numerator / denominator into one (2, W) slab: each shift is a single roll
        sub01 = lax.broadcasted_iota(jnp.int32, (2, W), 0)
        we = jnp.where(sub01 == 0, q_safe * e, e)
        we = jnp.where(valid, we, 0.0)                 # padding contributes exactly 0

        we_sum = we                                    # forward window  j in [t, t+TAU-1]
        for k in range(1, TAU):
            we_sum = we_sum + pltpu.roll(we, W - k, 1)       # lane t picks up lane t+k

        l_min = q_min_src                              # causal window  j in [t-TAU+1, t]
        for k in range(1, TAU):
            l_min = jnp.minimum(l_min, pltpu.roll(q_min_src, k, 1))  # wrap lands on QPAD

        w_sum = we_sum[0:1, :]
        e_sum = we_sum[1:2, :]
        m = w_sum / jnp.maximum(e_sum, 1e-30)          # exact divide (outside hot loop)
        tp = BETA * m + (1.0 - BETA) * l_min
        tp_sum = jnp.sum(jnp.where(valid, tp, 0.0), axis=1, keepdims=True)   # (1, 1)
        score_ref[...] = tp_sum * invlen_ref[...]


# --------------------------------- host-side prep ----------------------------------
def prepare_params(params, use_bf16_matmul=True):
    """One-time weight folding / transposition (outside the hot path).

    Wfold = W0^T @ Wih^T collapses ANN.fc0 and the GRU input projection into a single
    matmul.  The three recurrent gate weights are fused into one (H, 3H) matrix so the
    serial recurrence issues a single MXU op per step.  b_hr / b_hz are step-constant and
    folded into the input-side bias; b_hn stays on the recurrent side as [0, 0, b_hn].
    use_bf16_matmul=True (default) runs the big feature matmul in bf16 with f32
    accumulation; recurrence / pooling stay f32.
    """
    H = params["whh"].shape[1]
    w0t = params["w0"].T                              # (Din, R)
    wiht = params["wih"].T                            # (R, 3H)   gate order: r, z, n
    whht = params["whh"].T                            # (H, 3H)
    wfold = w0t @ wiht                                # (Din, 3H)
    bfold = params["b0"] @ wiht + params["bih"]       # (1, 3H)
    bfold = bfold.at[:, :2 * H].add(params["bhh"][:, :2 * H])
    bhh_n3 = jnp.concatenate(
        [jnp.zeros((1, 2 * H), jnp.float32), params["bhh"][:, 2 * H:3 * H]], axis=1)
    mm_dtype = jnp.bfloat16 if use_bf16_matmul else jnp.float32
    return {
        "wfold": wfold.astype(mm_dtype),
        "bfold": bfold.astype(jnp.float32),
        "whh_rzn": whht.astype(jnp.float32),          # fused recurrent weight (H, 3H)
        "bhh_n3": bhh_n3.astype(jnp.float32),         # (1, 3H)
        "wq": params["wq"].astype(jnp.float32),       # (1, H)
        "bq": params["bq"].astype(jnp.float32),       # (1, 1)
    }


def tivqa_forward(features, input_length, prep, tchunk=8):
    """features: [T, Din] f32; input_length: [1] f32 (valid frames <= T); returns [1] f32.

    tchunk: rows of features streamed per grid step (multiple of GROUP).  Pick 128-256 at
    production shapes (Din ~ 8192) and size so 2*tchunk*Din*dtype + Din*3H + tchunk*3H fits
    the scoped VMEM limit (32 MiB default on v6e/v7x, 16 MiB on v5e).
    """
    assert tchunk % GROUP == 0
    T, Din = features.shape
    H = prep["wq"].shape[1]
    Tpad = _round_up(T, tchunk)
    if Tpad != T:
        features = jnp.pad(features, ((0, Tpad - T), (0, 0)))
    feat = features.astype(prep["wfold"].dtype)
    n_chunks = Tpad // tchunk
    W = _round_up(Tpad + TAU - 1, 128)                # lane-dense pooling width (no roll wrap)

    len_i = input_length.astype(jnp.int32)                              # (1,)
    inv_len = (1.0 / input_length).astype(jnp.float32).reshape(1, 1)    # (1, 1)

    grid_spec = pltpu.PrefetchScalarGridSpec(
        num_scalar_prefetch=1,
        grid=(n_chunks,),
        in_specs=[
            pl.BlockSpec((tchunk, Din), lambda i, *_: (i, 0)),    # feat: streamed over T
            pl.BlockSpec((Din, 3 * H), lambda i, *_: (0, 0)),     # wfold: resident
            pl.BlockSpec((1, 3 * H), lambda i, *_: (0, 0)),       # bfold
            pl.BlockSpec((H, 3 * H), lambda i, *_: (0, 0)),       # fused whh
            pl.BlockSpec((1, 3 * H), lambda i, *_: (0, 0)),       # [0,0,b_hn]
            pl.BlockSpec((1, H), lambda i, *_: (0, 0)),           # wq
            pl.BlockSpec((1, 1), lambda i, *_: (0, 0)),           # bq
            pl.BlockSpec((1, 1), lambda i, *_: (0, 0)),           # 1/L
        ],
        out_specs=pl.BlockSpec((1, 1), lambda i, *_: (0, 0)),
        scratch_shapes=[
            pltpu.VMEM((tchunk, 3 * H), jnp.float32),   # chunk gate preactivations
            pltpu.VMEM((GROUP, H), jnp.float32),        # per-group hidden stash
            pltpu.VMEM((1, H), jnp.float32),            # carried hidden state
            pltpu.VMEM((1, W), jnp.float32),            # carried lane-dense q row
        ],
    )

    # TODO(synk): for batched videos add a leading "parallel" batch axis (v7x: 2 TensorCores)
    # and run the recurrence with h as (B, H) to raise MXU utilization.
    out = pl.pallas_call(
        tivqa_kernel,
        out_shape=jax.ShapeDtypeStruct((1, 1), jnp.float32),
        grid_spec=grid_spec,
        compiler_params=pltpu.CompilerParams(dimension_semantics=("arbitrary",)),
    )(len_i, feat,
      prep["wfold"], prep["bfold"], prep["whh_rzn"], prep["bhh_n3"],
      prep["wq"], prep["bq"], inv_len)
    score = jnp.zeros_like(input_length).at[0].set(out[0, 0])
    return score


# ----------------------------- pure-JAX reference ------------------------------
def tivqa_reference(features, input_length, params):
    w0, b0 = params["w0"], params["b0"][0]
    wih, whh = params["wih"], params["whh"]
    bih, bhh = params["bih"][0], params["bhh"][0]
    wq, bq = params["wq"][0], params["bq"][0, 0]
    H = whh.shape[1]

    x = features @ w0.T + b0                                              # [T, R]

    def step(h, xt):
        xg = wih @ xt + bih
        hg = whh @ h + bhh
        r = jax.nn.sigmoid(xg[:H] + hg[:H])
        z = jax.nn.sigmoid(xg[H:2 * H] + hg[H:2 * H])
        n = jnp.tanh(xg[2 * H:] + r * hg[2 * H:])
        h_new = (1.0 - z) * n + z * h
        return h_new, h_new

    _, outs = lax.scan(step, jnp.zeros((H,), jnp.float32), x)             # [T, H]
    q = outs @ wq + bq                                                    # [T]

    L = int(input_length[0])
    qL = q[:L]
    w = qL * jnp.exp(-qL)
    e = jnp.exp(-qL)
    l = jnp.stack([jnp.min(qL[max(0, t - TAU + 1): t + 1]) for t in range(L)])
    m = jnp.stack([jnp.sum(w[t: t + TAU]) / jnp.sum(e[t: t + TAU]) for t in range(L)])
    tp = BETA * m + (1.0 - BETA) * l
    return jnp.mean(tp)


# ------------------------------ parameter setup --------------------------------
def init_params(key, input_size, reduced_size, hidden_size):
    ks = jax.random.split(key, 8)

    def u(k, shape, bound):
        return jax.random.uniform(k, shape, jnp.float32, -bound, bound)

    b_fc = 1.0 / math.sqrt(input_size)
    b_gru = 1.0 / math.sqrt(hidden_size)
    b_q = 1.0 / math.sqrt(hidden_size)
    return {
        "w0": u(ks[0], (reduced_size, input_size), b_fc),        # ANN.fc0.weight
        "b0": u(ks[1], (1, reduced_size), b_fc),                 # ANN.fc0.bias
        "wih": u(ks[2], (3 * hidden_size, reduced_size), b_gru), # GRU weight_ih_l0 (r,z,n)
        "whh": u(ks[3], (3 * hidden_size, hidden_size), b_gru),  # GRU weight_hh_l0
        "bih": u(ks[4], (1, 3 * hidden_size), b_gru),            # GRU bias_ih_l0
        "bhh": u(ks[5], (1, 3 * hidden_size), b_gru),            # GRU bias_hh_l0
        "wq": u(ks[6], (1, hidden_size), b_q),                   # q.weight
        "bq": u(ks[7], (1, 1), b_q),                             # q.bias
    }


if __name__ == "__main__":
    # small shapes consistent with the module (scaled-down input/reduced/hidden sizes)
    T, D_IN, REDUCED, HIDDEN = 24, 64, 32, 32

    key = jax.random.PRNGKey(0)
    k_param, k_feat = jax.random.split(key)
    params = init_params(k_param, D_IN, REDUCED, HIDDEN)
    # f32 feature matmul here for a tight numeric check; production uses bf16 (default).
    prep = prepare_params(params, use_bf16_matmul=False)

    features = jax.random.normal(k_feat, (T, D_IN), jnp.float32)  # precomputed spatial features
    input_length = jnp.array([20.0], jnp.float32)                 # valid frames (<= T)

    score = tivqa_forward(features, input_length, prep, tchunk=8)
    score = jax.block_until_ready(score)

    ref = tivqa_reference(features, input_length, params)
    assert score.shape == input_length.shape
    assert jnp.allclose(score[0], ref, atol=5e-3, rtol=5e-3), (score, ref)

    print("KERNEL_OK")
</pallas_src>

<mosaic_0001>
module attributes {stable_mosaic.version = 11 : i64} {
  func.func @tivqa_kernel(%arg0: i32, %arg1: memref<1xi32, #tpu.memory_space<smem>>, %arg2: memref<8x64xf32, #tpu.memory_space<vmem>>, %arg3: memref<64x96xf32, #tpu.memory_space<vmem>>, %arg4: memref<1x96xf32, #tpu.memory_space<vmem>>, %arg5: memref<32x96xf32, #tpu.memory_space<vmem>>, %arg6: memref<1x96xf32, #tpu.memory_space<vmem>>, %arg7: memref<1x32xf32, #tpu.memory_space<vmem>>, %arg8: memref<1x1xf32, #tpu.memory_space<vmem>>, %arg9: memref<1x1xf32, #tpu.memory_space<vmem>>, %arg10: memref<1x1xf32, #tpu.memory_space<vmem>>, %arg11: memref<8x96xf32, #tpu.memory_space<vmem>>, %arg12: memref<8x32xf32, #tpu.memory_space<vmem>>, %arg13: memref<1x32xf32, #tpu.memory_space<vmem>>, %arg14: memref<1x128xf32, #tpu.memory_space<vmem>>) attributes {dimension_semantics = [#tpu.dimension_semantics<arbitrary>], iteration_bounds = array<i64: 3>, scalar_prefetch = 1 : i64, scratch_operands = 4 : i64, tpu.core_type = #tpu.core_type<tc>, window_params = [{transform_indices = @transform_0, window_bounds = array<i64: 8, 64>}, {pipeline_mode = #tpu.pipeline_mode<synchronous>, transform_indices = @transform_1, window_bounds = array<i64: 64, 96>}, {pipeline_mode = #tpu.pipeline_mode<synchronous>, transform_indices = @transform_2, window_bounds = array<i64: 1, 96>}, {pipeline_mode = #tpu.pipeline_mode<synchronous>, transform_indices = @transform_3, window_bounds = array<i64: 32, 96>}, {pipeline_mode = #tpu.pipeline_mode<synchronous>, transform_indices = @transform_4, window_bounds = array<i64: 1, 96>}, {pipeline_mode = #tpu.pipeline_mode<synchronous>, transform_indices = @transform_5, window_bounds = array<i64: 1, 32>}, {pipeline_mode = #tpu.pipeline_mode<synchronous>, transform_indices = @transform_6, window_bounds = array<i64: 1, 1>}, {pipeline_mode = #tpu.pipeline_mode<synchronous>, transform_indices = @transform_7, window_bounds = array<i64: 1, 1>}, {pipeline_mode = #tpu.pipeline_mode<synchronous>, transform_indices = @transform_8, window_bounds = array<i64: 1, 1>}]} {
    %c0_i32 = arith.constant 0 : i32
    %0 = arith.cmpi eq, %arg0, %c0_i32 : i32
    %1 = arith.extui %0 : i1 to i32
    %c0_i32_0 = arith.constant 0 : i32
    %2 = arith.cmpi ne, %1, %c0_i32_0 : i32
    scf.if %2 {
      %cst_66 = arith.constant 0.000000e+00 : f32
      %232 = vector.broadcast %cst_66 : f32 to vector<1x32xf32>
      %c0_67 = arith.constant 0 : index
      %c0_68 = arith.constant 0 : index
      %233 = vector.load %arg13[%c0_67, %c0_68] : memref<1x32xf32, #tpu.memory_space<vmem>>, vector<1x32xf32>
      tpu.vector_store %arg13[%c0_67, %c0_68], %232 {strides = array<i32>} : memref<1x32xf32, #tpu.memory_space<vmem>>, vector<1x32xf32>,
      %cst_69 = arith.constant 0.000000e+00 : f32
      %234 = vector.broadcast %cst_69 : f32 to vector<1x128xf32>
      %c0_70 = arith.constant 0 : index
      %c0_71 = arith.constant 0 : index
      %235 = vector.load %arg14[%c0_70, %c0_71] : memref<1x128xf32, #tpu.memory_space<vmem>>, vector<1x128xf32>
      tpu.vector_store %arg14[%c0_70, %c0_71], %234 {strides = array<i32>} : memref<1x128xf32, #tpu.memory_space<vmem>>, vector<1x128xf32>,
    } else {
    }
    %c0 = arith.constant 0 : index
    %c0_1 = arith.constant 0 : index
    %3 = vector.load %arg2[%c0, %c0_1] : memref<8x64xf32, #tpu.memory_space<vmem>>, vector<8x64xf32>
    %c0_2 = arith.constant 0 : index
    %c0_3 = arith.constant 0 : index
    %4 = vector.load %arg3[%c0_2, %c0_3] : memref<64x96xf32, #tpu.memory_space<vmem>>, vector<64x96xf32>
    %cst = arith.constant dense<0.000000e+00> : vector<8x96xf32>
    %5 = tpu.matmul %3, %4, %cst {dimension_numbers = #tpu.dot_dimension_numbers<[1], [0], [0], [1], [0, 0, 1, 1], [], []>} : vector<8x64xf32>, vector<64x96xf32>, vector<8x96xf32> -> vector<8x96xf32>
    %c0_4 = arith.constant 0 : index
    %c0_5 = arith.constant 0 : index
    %6 = vector.load %arg4[%c0_4, %c0_5] : memref<1x96xf32, #tpu.memory_space<vmem>>, vector<1x96xf32>
    %7 = vector.broadcast %6 : vector<1x96xf32> to vector<8x96xf32>
    %8 = arith.addf %5, %7 : vector<8x96xf32>
    %c0_6 = arith.constant 0 : index
    %c0_7 = arith.constant 0 : index
    %9 = vector.load %arg11[%c0_6, %c0_7] : memref<8x96xf32, #tpu.memory_space<vmem>>, vector<8x96xf32>
    tpu.vector_store %arg11[%c0_6, %c0_7], %8 {strides = array<i32>} : memref<8x96xf32, #tpu.memory_space<vmem>>, vector<8x96xf32>,
    %c0_8 = arith.constant 0 : index
    %c0_9 = arith.constant 0 : index
    %10 = vector.load %arg5[%c0_8, %c0_9] : memref<32x96xf32, #tpu.memory_space<vmem>>, vector<32x96xf32>
    %c0_10 = arith.constant 0 : index
    %c0_11 = arith.constant 0 : index
    %11 = vector.load %arg6[%c0_10, %c0_11] : memref<1x96xf32, #tpu.memory_space<vmem>>, vector<1x96xf32>
    %c0_12 = arith.constant 0 : index
    %c0_13 = arith.constant 0 : index
    %12 = vector.load %arg7[%c0_12, %c0_13] : memref<1x32xf32, #tpu.memory_space<vmem>>, vector<1x32xf32>
    %c0_14 = arith.constant 0 : index
    %c0_15 = arith.constant 0 : index
    %13 = vector.load %arg8[%c0_14, %c0_15] : memref<1x1xf32, #tpu.memory_space<vmem>>, vector<1x1xf32>
    %14 = tpu.iota {dimensions = array<i32: 1>} : vector<8x128xi32>
    %15 = tpu.iota {dimensions = array<i32: 0>} : vector<8x128xi32>
    %16 = arith.subi %14, %15 : vector<8x128xi32>
    %c8_i32 = arith.constant 8 : i32
    %17 = arith.muli %arg0, %c8_i32 : i32
    %c0_16 = arith.constant 0 : index
    %c0_17 = arith.constant 0 : index
    %18 = vector.load %arg13[%c0_16, %c0_17] : memref<1x32xf32, #tpu.memory_space<vmem>>, vector<1x32xf32>
    %c0_18 = arith.constant 0 : index
    %c0_19 = arith.constant 0 : index
    %19 = vector.load %arg14[%c0_18, %c0_19] : memref<1x128xf32, #tpu.memory_space<vmem>>, vector<1x128xf32>
    %c0_i32_20 = arith.constant 0 : i32
    %c8_i32_21 = arith.constant 8 : i32
    %20 = arith.muli %c0_i32_20, %c8_i32_21 : i32
    %21 = tpu.assume_multiple %20, 8 : i32
    %22 = arith.index_cast %21 : i32 to index
    %c0_22 = arith.constant 0 : index
    %23 = vector.load %arg11[%22, %c0_22] : memref<8x96xf32, #tpu.memory_space<vmem>>, vector<8x96xf32>
    %24 = vector.extract_strided_slice %23 {offsets = [0, 0], sizes = [8, 64], strides = [1, 1]} : vector<8x96xf32> to vector<8x64xf32>
    %25 = vector.extract_strided_slice %23 {offsets = [0, 64], sizes = [8, 32], strides = [1, 1]} : vector<8x96xf32> to vector<8x32xf32>
    %26 = vector.extract_strided_slice %24 {offsets = [0, 0], sizes = [1, 64], strides = [1, 1]} : vector<8x64xf32> to vector<1x64xf32>
    %27 = vector.extract_strided_slice %25 {offsets = [0, 0], sizes = [1, 32], strides = [1, 1]} : vector<8x32xf32> to vector<1x32xf32>
    %cst_23 = arith.constant dense<0.000000e+00> : vector<1x96xf32>
    %28 = tpu.matmul %18, %10, %cst_23 {dimension_numbers = #tpu.dot_dimension_numbers<[1], [0], [0], [1], [0, 0, 1, 1], [], []>} : vector<1x32xf32>, vector<32x96xf32>, vector<1x96xf32> -> vector<1x96xf32>
    %29 = arith.addf %28, %11 : vector<1x96xf32>
    %30 = vector.extract_strided_slice %29 {offsets = [0, 0], sizes = [1, 64], strides = [1, 1]} : vector<1x96xf32> to vector<1x64xf32>
    %31 = arith.addf %26, %30 : vector<1x64xf32>
    %32 = arith.negf %31 : vector<1x64xf32>
    %33 = math.exp %32 : vector<1x64xf32>
    %cst_24 = arith.constant 1.000000e+00 : f32
    %34 = vector.broadcast %cst_24 : f32 to vector<1x64xf32>
    %35 = arith.addf %34, %33 : vector<1x64xf32>
    %36 = arith.divf %34, %35 : vector<1x64xf32>
    %37 = vector.extract_strided_slice %36 {offsets = [0, 0], sizes = [1, 32], strides = [1, 1]} : vector<1x64xf32> to vector<1x32xf32>
    %38 = vector.extract_strided_slice %36 {offsets = [0, 32], sizes = [1, 32], strides = [1, 1]} : vector<1x64xf32> to vector<1x32xf32>
    %39 = vector.extract_strided_slice %29 {offsets = [0, 64], sizes = [1, 32], strides = [1, 1]} : vector<1x96xf32> to vector<1x32xf32>
    %40 = arith.mulf %37, %39 : vector<1x32xf32>
    %41 = arith.addf %27, %40 : vector<1x32xf32>
    %42 = math.tanh %41 : vector<1x32xf32>
    %cst_25 = arith.constant 1.000000e+00 : f32
    %43 = vector.broadcast %cst_25 : f32 to vector<1x32xf32>
    %44 = arith.subf %43, %38 : vector<1x32xf32>
    %45 = arith.mulf %44, %42 : vector<1x32xf32>
    %46 = arith.mulf %38, %18 : vector<1x32xf32>
    %47 = arith.addf %45, %46 : vector<1x32xf32>
    %c0_26 = arith.constant 0 : index
    %c0_27 = arith.constant 0 : index
    %48 = vector.load %arg12[%c0_26, %c0_27] : memref<8x32xf32, #tpu.memory_space<vmem>>, vector<1x32xf32>
    tpu.vector_store %arg12[%c0_26, %c0_27], %47 {strides = array<i32>} : memref<8x32xf32, #tpu.memory_space<vmem>>, vector<1x32xf32>,
    %49 = vector.extract_strided_slice %24 {offsets = [1, 0], sizes = [1, 64], strides = [1, 1]} : vector<8x64xf32> to vector<1x64xf32>
    %50 = vector.extract_strided_slice %25 {offsets = [1, 0], sizes = [1, 32], strides = [1, 1]} : vector<8x32xf32> to vector<1x32xf32>
    %cst_28 = arith.constant dense<0.000000e+00> : vector<1x96xf32>
    %51 = tpu.matmul %47, %10, %cst_28 {dimension_numbers = #tpu.dot_dimension_numbers<[1], [0], [0], [1], [0, 0, 1, 1], [], []>} : vector<1x32xf32>, vector<32x96xf32>, vector<1x96xf32> -> vector<1x96xf32>
    %52 = arith.addf %51, %11 : vector<1x96xf32>
    %53 = vector.extract_strided_slice %52 {offsets = [0, 0], sizes = [1, 64], strides = [1, 1]} : vector<1x96xf32> to vector<1x64xf32>
    %54 = arith.addf %49, %53 : vector<1x64xf32>
    %55 = arith.negf %54 : vector<1x64xf32>
    %56 = math.exp %55 : vector<1x64xf32>
    %cst_29 = arith.constant 1.000000e+00 : f32
    %57 = vector.broadcast %cst_29 : f32 to vector<1x64xf32>
    %58 = arith.addf %57, %56 : vector<1x64xf32>
    %59 = arith.divf %57, %58 : vector<1x64xf32>
    %60 = vector.extract_strided_slice %59 {offsets = [0, 0], sizes = [1, 32], strides = [1, 1]} : vector<1x64xf32> to vector<1x32xf32>
    %61 = vector.extract_strided_slice %59 {offsets = [0, 32], sizes = [1, 32], strides = [1, 1]} : vector<1x64xf32> to vector<1x32xf32>
    %62 = vector.extract_strided_slice %52 {offsets = [0, 64], sizes = [1, 32], strides = [1, 1]} : vector<1x96xf32> to vector<1x32xf32>
    %63 = arith.mulf %60, %62 : vector<1x32xf32>
    %64 = arith.addf %50, %63 : vector<1x32xf32>
    %65 = math.tanh %64 : vector<1x32xf32>
    %cst_30 = arith.constant 1.000000e+00 : f32
    %66 = vector.broadcast %cst_30 : f32 to vector<1x32xf32>
    %67 = arith.subf %66, %61 : vector<1x32xf32>
    %68 = arith.mulf %67, %65 : vector<1x32xf32>
    %69 = arith.mulf %61, %47 : vector<1x32xf32>
    %70 = arith.addf %68, %69 : vector<1x32xf32>
    %c1 = arith.constant 1 : index
    %c0_31 = arith.constant 0 : index
    %71 = vector.load %arg12[%c1, %c0_31] : memref<8x32xf32, #tpu.memory_space<vmem>>, vector<1x32xf32>
    tpu.vector_store %arg12[%c1, %c0_31], %70 {strides = array<i32>} : memref<8x32xf32, #tpu.memory_space<vmem>>, vector<1x32xf32>,
    %72 = vector.extract_strided_slice %24 {offsets = [2, 0], sizes = [1, 64], strides = [1, 1]} : vector<8x64xf32> to vector<1x64xf32>
    %73 = vector.extract_strided_slice %25 {offsets = [2, 0], sizes = [1, 32], strides = [1, 1]} : vector<8x32xf32> to vector<1x32xf32>
    %cst_32 = arith.constant dense<0.000000e+00> : vector<1x96xf32>
    %74 = tpu.matmul %70, %10, %cst_32 {dimension_numbers = #tpu.dot_dimension_numbers<[1], [0], [0], [1], [0, 0, 1, 1], [], []>} : vector<1x32xf32>, vector<32x96xf32>, vector<1x96xf32> -> vector<1x96xf32>
    %75 = arith.addf %74, %11 : vector<1x96xf32>
    %76 = vector.extract_strided_slice %75 {offsets = [0, 0], sizes = [1, 64], strides = [1, 1]} : vector<1x96xf32> to vector<1x64xf32>
    %77 = arith.addf %72, %76 : vector<1x64xf32>
    %78 = arith.negf %77 : vector<1x64xf32>
    %79 = math.exp %78 : vector<1x64xf32>
    %cst_33 = arith.constant 1.000000e+00 : f32
    %80 = vector.broadcast %cst_33 : f32 to vector<1x64xf32>
    %81 = arith.addf %80, %79 : vector<1x64xf32>
    %82 = arith.divf %80, %81 : vector<1x64xf32>
    %83 = vector.extract_strided_slice %82 {offsets = [0, 0], sizes = [1, 32], strides = [1, 1]} : vector<1x64xf32> to vector<1x32xf32>
    %84 = vector.extract_strided_slice %82 {offsets = [0, 32], sizes = [1, 32], strides = [1, 1]} : vector<1x64xf32> to vector<1x32xf32>
    %85 = vector.extract_strided_slice %75 {offsets = [0, 64], sizes = [1, 32], strides = [1, 1]} : vector<1x96xf32> to vector<1x32xf32>
    %86 = arith.mulf %83, %85 : vector<1x32xf32>
    %87 = arith.addf %73, %86 : vector<1x32xf32>
    %88 = math.tanh %87 : vector<1x32xf32>
    %cst_34 = arith.constant 1.000000e+00 : f32
    %89 = vector.broadcast %cst_34 : f32 to vector<1x32xf32>
    %90 = arith.subf %89, %84 : vector<1x32xf32>
    %91 = arith.mulf %90, %88 : vector<1x32xf32>
    %92 = arith.mulf %84, %70 : vector<1x32xf32>
    %93 = arith.addf %91, %92 : vector<1x32xf32>
    %c2 = arith.constant 2 : index
    %c0_35 = arith.constant 0 : index
    %94 = vector.load %arg12[%c2, %c0_35] : memref<8x32xf32, #tpu.memory_space<vmem>>, vector<1x32xf32>
    tpu.vector_store %arg12[%c2, %c0_35], %93 {strides = array<i32>} : memref<8x32xf32, #tpu.memory_space<vmem>>, vector<1x32xf32>,
    %95 = vector.extract_strided_slice %24 {offsets = [3, 0], sizes = [1, 64], strides = [1, 1]} : vector<8x64xf32> to vector<1x64xf32>
    %96 = vector.extract_strided_slice %25 {offsets = [3, 0], sizes = [1, 32], strides = [1, 1]} : vector<8x32xf32> to vector<1x32xf32>
    %cst_36 = arith.constant dense<0.000000e+00> : vector<1x96xf32>
    %97 = tpu.matmul %93, %10, %cst_36 {dimension_numbers = #tpu.dot_dimension_numbers<[1], [0], [0], [1], [0, 0, 1, 1], [], []>} : vector<1x32xf32>, vector<32x96xf32>, vector<1x96xf32> -> vector<1x96xf32>
    %98 = arith.addf %97, %11 : vector<1x96xf32>
    %99 = vector.extract_strided_slice %98 {offsets = [0, 0], sizes = [1, 64], strides = [1, 1]} : vector<1x96xf32> to vector<1x64xf32>
    %100 = arith.addf %95, %99 : vector<1x64xf32>
    %101 = arith.negf %100 : vector<1x64xf32>
    %102 = math.exp %101 : vector<1x64xf32>
    %cst_37 = arith.constant 1.000000e+00 : f32
    %103 = vector.broadcast %cst_37 : f32 to vector<1x64xf32>
    %104 = arith.addf %103, %102 : vector<1x64xf32>
    %105 = arith.divf %103, %104 : vector<1x64xf32>
    %106 = vector.extract_strided_slice %105 {offsets = [0, 0], sizes = [1, 32], strides = [1, 1]} : vector<1x64xf32> to vector<1x32xf32>
    %107 = vector.extract_strided_slice %105 {offsets = [0, 32], sizes = [1, 32], strides = [1, 1]} : vector<1x64xf32> to vector<1x32xf32>
    %108 = vector.extract_strided_slice %98 {offsets = [0, 64], sizes = [1, 32], strides = [1, 1]} : vector<1x96xf32> to vector<1x32xf32>
    %109 = arith.mulf %106, %108 : vector<1x32xf32>
    %110 = arith.addf %96, %109 : vector<1x32xf32>
    %111 = math.tanh %110 : vector<1x32xf32>
    %cst_38 = arith.constant 1.000000e+00 : f32
    %112 = vector.broadcast %cst_38 : f32 to vector<1x32xf32>
    %113 = arith.subf %112, %107 : vector<1x32xf32>
    %114 = arith.mulf %113, %111 : vector<1x32xf32>
    %115 = arith.mulf %107, %93 : vector<1x32xf32>
    %116 = arith.addf %114, %115 : vector<1x32xf32>
    %c3 = arith.constant 3 : index
    %c0_39 = arith.constant 0 : index
    %117 = vector.load %arg12[%c3, %c0_39] : memref<8x32xf32, #tpu.memory_space<vmem>>, vector<1x32xf32>
    tpu.vector_store %arg12[%c3, %c0_39], %116 {strides = array<i32>} : memref<8x32xf32, #tpu.memory_space<vmem>>, vector<1x32xf32>,
    %118 = vector.extract_strided_slice %24 {offsets = [4, 0], sizes = [1, 64], strides = [1, 1]} : vector<8x64xf32> to vector<1x64xf32>
    %119 = vector.extract_strided_slice %25 {offsets = [4, 0], sizes = [1, 32], strides = [1, 1]} : vector<8x32xf32> to vector<1x32xf32>
    %cst_40 = arith.constant dense<0.000000e+00> : vector<1x96xf32>
    %120 = tpu.matmul %116, %10, %cst_40 {dimension_numbers = #tpu.dot_dimension_numbers<[1], [0], [0], [1], [0, 0, 1, 1], [], []>} : vector<1x32xf32>, vector<32x96xf32>, vector<1x96xf32> -> vector<1x96xf32>
    %121 = arith.addf %120, %11 : vector<1x96xf32>
    %122 = vector.extract_strided_slice %121 {offsets = [0, 0], sizes = [1, 64], strides = [1, 1]} : vector<1x96xf32> to vector<1x64xf32>
    %123 = arith.addf %118, %122 : vector<1x64xf32>
    %124 = arith.negf %123 : vector<1x64xf32>
    %125 = math.exp %124 : vector<1x64xf32>
    %cst_41 = arith.constant 1.000000e+00 : f32
    %126 = vector.broadcast %cst_41 : f32 to vector<1x64xf32>
    %127 = arith.addf %126, %125 : vector<1x64xf32>
    %128 = arith.divf %126, %127 : vector<1x64xf32>
    %129 = vector.extract_strided_slice %128 {offsets = [0, 0], sizes = [1, 32], strides = [1, 1]} : vector<1x64xf32> to vector<1x32xf32>
    %130 = vector.extract_strided_slice %128 {offsets = [0, 32], sizes = [1, 32], strides = [1, 1]} : vector<1x64xf32> to vector<1x32xf32>
    %131 = vector.extract_strided_slice %121 {offsets = [0, 64], sizes = [1, 32], strides = [1, 1]} : vector<1x96xf32> to vector<1x32xf32>
    %132 = arith.mulf %129, %131 : vector<1x32xf32>
    %133 = arith.addf %119, %132 : vector<1x32xf32>
    %134 = math.tanh %133 : vector<1x32xf32>
    %cst_42 = arith.constant 1.000000e+00 : f32
    %135 = vector.broadcast %cst_42 : f32 to vector<1x32xf32>
    %136 = arith.subf %135, %130 : vector<1x32xf32>
    %137 = arith.mulf %136, %134 : vector<1x32xf32>
    %138 = arith.mulf %130, %116 : vector<1x32xf32>
    %139 = arith.addf %137, %138 : vector<1x32xf32>
    %c4 = arith.constant 4 : index
    %c0_43 = arith.constant 0 : index
    %140 = vector.load %arg12[%c4, %c0_43] : memref<8x32xf32, #tpu.memory_space<vmem>>, vector<1x32xf32>
    tpu.vector_store %arg12[%c4, %c0_43], %139 {strides = array<i32>} : memref<8x32xf32, #tpu.memory_space<vmem>>, vector<1x32xf32>,
    %141 = vector.extract_strided_slice %24 {offsets = [5, 0], sizes = [1, 64], strides = [1, 1]} : vector<8x64xf32> to vector<1x64xf32>
    %142 = vector.extract_strided_slice %25 {offsets = [5, 0], sizes = [1, 32], strides = [1, 1]} : vector<8x32xf32> to vector<1x32xf32>
    %cst_44 = arith.constant dense<0.000000e+00> : vector<1x96xf32>
    %143 = tpu.matmul %139, %10, %cst_44 {dimension_numbers = #tpu.dot_dimension_numbers<[1], [0], [0], [1], [0, 0, 1, 1], [], []>} : vector<1x32xf32>, vector<32x96xf32>, vector<1x96xf32> -> vector<1x96xf32>
    %144 = arith.addf %143, %11 : vector<1x96xf32>
    %145 = vector.extract_strided_slice %144 {offsets = [0, 0], sizes = [1, 64], strides = [1, 1]} : vector<1x96xf32> to vector<1x64xf32>
    %146 = arith.addf %141, %145 : vector<1x64xf32>
    %147 = arith.negf %146 : vector<1x64xf32>
    %148 = math.exp %147 : vector<1x64xf32>
    %cst_45 = arith.constant 1.000000e+00 : f32
    %149 = vector.broadcast %cst_45 : f32 to vector<1x64xf32>
    %150 = arith.addf %149, %148 : vector<1x64xf32>
    %151 = arith.divf %149, %150 : vector<1x64xf32>
    %152 = vector.extract_strided_slice %151 {offsets = [0, 0], sizes = [1, 32], strides = [1, 1]} : vector<1x64xf32> to vector<1x32xf32>
    %153 = vector.extract_strided_slice %151 {offsets = [0, 32], sizes = [1, 32], strides = [1, 1]} : vector<1x64xf32> to vector<1x32xf32>
    %154 = vector.extract_strided_slice %144 {offsets = [0, 64], sizes = [1, 32], strides = [1, 1]} : vector<1x96xf32> to vector<1x32xf32>
    %155 = arith.mulf %152, %154 : vector<1x32xf32>
    %156 = arith.addf %142, %155 : vector<1x32xf32>
    %157 = math.tanh %156 : vector<1x32xf32>
    %cst_46 = arith.constant 1.000000e+00 : f32
    %158 = vector.broadcast %cst_46 : f32 to vector<1x32xf32>
    %159 = arith.subf %158, %153 : vector<1x32xf32>
    %160 = arith.mulf %159, %157 : vector<1x32xf32>
    %161 = arith.mulf %153, %139 : vector<1x32xf32>
    %162 = arith.addf %160, %161 : vector<1x32xf32>
    %c5 = arith.constant 5 : index
    %c0_47 = arith.constant 0 : index
    %163 = vector.load %arg12[%c5, %c0_47] : memref<8x32xf32, #tpu.memory_space<vmem>>, vector<1x32xf32>
    tpu.vector_store %arg12[%c5, %c0_47], %162 {strides = array<i32>} : memref<8x32xf32, #tpu.memory_space<vmem>>, vector<1x32xf32>,
    %164 = vector.extract_strided_slice %24 {offsets = [6, 0], sizes = [1, 64], strides = [1, 1]} : vector<8x64xf32> to vector<1x64xf32>
    %165 = vector.extract_strided_slice %25 {offsets = [6, 0], sizes = [1, 32], strides = [1, 1]} : vector<8x32xf32> to vector<1x32xf32>
    %cst_48 = arith.constant dense<0.000000e+00> : vector<1x96xf32>
    %166 = tpu.matmul %162, %10, %cst_48 {dimension_numbers = #tpu.dot_dimension_numbers<[1], [0], [0], [1], [0, 0, 1, 1], [], []>} : vector<1x32xf32>, vector<32x96xf32>, vector<1x96xf32> -> vector<1x96xf32>
    %167 = arith.addf %166, %11 : vector<1x96xf32>
    %168 = vector.extract_strided_slice %167 {offsets = [0, 0], sizes = [1, 64], strides = [1, 1]} : vector<1x96xf32> to vector<1x64xf32>
    %169 = arith.addf %164, %168 : vector<1x64xf32>
    %170 = arith.negf %169 : vector<1x64xf32>
    %171 = math.exp %170 : vector<1x64xf32>
    %cst_49 = arith.constant 1.000000e+00 : f32
    %172 = vector.broadcast %cst_49 : f32 to vector<1x64xf32>
    %173 = arith.addf %172, %171 : vector<1x64xf32>
    %174 = arith.divf %172, %173 : vector<1x64xf32>
    %175 = vector.extract_strided_slice %174 {offsets = [0, 0], sizes = [1, 32], strides = [1, 1]} : vector<1x64xf32> to vector<1x32xf32>
    %176 = vector.extract_strided_slice %174 {offsets = [0, 32], sizes = [1, 32], strides = [1, 1]} : vector<1x64xf32> to vector<1x32xf32>
    %177 = vector.extract_strided_slice %167 {offsets = [0, 64], sizes = [1, 32], strides = [1, 1]} : vector<1x96xf32> to vector<1x32xf32>
    %178 = arith.mulf %175, %177 : vector<1x32xf32>
    %179 = arith.addf %165, %178 : vector<1x32xf32>
    %180 = math.tanh %179 : vector<1x32xf32>
    %cst_50 = arith.constant 1.000000e+00 : f32
    %181 = vector.broadcast %cst_50 : f32 to vector<1x32xf32>
    %182 = arith.subf %181, %176 : vector<1x32xf32>
    %183 = arith.mulf %182, %180 : vector<1x32xf32>
    %184 = arith.mulf %176, %162 : vector<1x32xf32>
    %185 = arith.addf %183, %184 : vector<1x32xf32>
    %c6 = arith.constant 6 : index
    %c0_51 = arith.constant 0 : index
    %186 = vector.load %arg12[%c6, %c0_51] : memref<8x32xf32, #tpu.memory_space<vmem>>, vector<1x32xf32>
    tpu.vector_store %arg12[%c6, %c0_51], %185 {strides = array<i32>} : memref<8x32xf32, #tpu.memory_space<vmem>>, vector<1x32xf32>,
    %187 = vector.extract_strided_slice %24 {offsets = [7, 0], sizes = [1, 64], strides = [1, 1]} : vector<8x64xf32> to vector<1x64xf32>
    %188 = vector.extract_strided_slice %25 {offsets = [7, 0], sizes = [1, 32], strides = [1, 1]} : vector<8x32xf32> to vector<1x32xf32>
    %cst_52 = arith.constant dense<0.000000e+00> : vector<1x96xf32>
    %189 = tpu.matmul %185, %10, %cst_52 {dimension_numbers = #tpu.dot_dimension_numbers<[1], [0], [0], [1], [0, 0, 1, 1], [], []>} : vector<1x32xf32>, vector<32x96xf32>, vector<1x96xf32> -> vector<1x96xf32>
    %190 = arith.addf %189, %11 : vector<1x96xf32>
    %191 = vector.extract_strided_slice %190 {offsets = [0, 0], sizes = [1, 64], strides = [1, 1]} : vector<1x96xf32> to vector<1x64xf32>
    %192 = arith.addf %187, %191 : vector<1x64xf32>
    %193 = arith.negf %192 : vector<1x64xf32>
    %194 = math.exp %193 : vector<1x64xf32>
    %cst_53 = arith.constant 1.000000e+00 : f32
    %195 = vector.broadcast %cst_53 : f32 to vector<1x64xf32>
    %196 = arith.addf %195, %194 : vector<1x64xf32>
    %197 = arith.divf %195, %196 : vector<1x64xf32>
    %198 = vector.extract_strided_slice %197 {offsets = [0, 0], sizes = [1, 32], strides = [1, 1]} : vector<1x64xf32> to vector<1x32xf32>
    %199 = vector.extract_strided_slice %197 {offsets = [0, 32], sizes = [1, 32], strides = [1, 1]} : vector<1x64xf32> to vector<1x32xf32>
    %200 = vector.extract_strided_slice %190 {offsets = [0, 64], sizes = [1, 32], strides = [1, 1]} : vector<1x96xf32> to vector<1x32xf32>
    %201 = arith.mulf %198, %200 : vector<1x32xf32>
    %202 = arith.addf %188, %201 : vector<1x32xf32>
    %203 = math.tanh %202 : vector<1x32xf32>
    %cst_54 = arith.constant 1.000000e+00 : f32
    %204 = vector.broadcast %cst_54 : f32 to vector<1x32xf32>
    %205 = arith.subf %204, %199 : vector<1x32xf32>
    %206 = arith.mulf %205, %203 : vector<1x32xf32>
    %207 = arith.mulf %199, %185 : vector<1x32xf32>
    %208 = arith.addf %206, %207 : vector<1x32xf32>
    %c7 = arith.constant 7 : index
    %c0_55 = arith.constant 0 : index
    %209 = vector.load %arg12[%c7, %c0_55] : memref<8x32xf32, #tpu.memory_space<vmem>>, vector<1x32xf32>
    tpu.vector_store %arg12[%c7, %c0_55], %208 {strides = array<i32>} : memref<8x32xf32, #tpu.memory_space<vmem>>, vector<1x32xf32>,
    %c0_56 = arith.constant 0 : index
    %c0_57 = arith.constant 0 : index
    %210 = vector.load %arg12[%c0_56, %c0_57] : memref<8x32xf32, #tpu.memory_space<vmem>>, vector<8x32xf32>
    %211 = vector.broadcast %12 : vector<1x32xf32> to vector<8x32xf32>
    %212 = arith.mulf %210, %211 : vector<8x32xf32>
    %cst_58 = arith.constant dense<0.000000e+00> : vector<8xf32>
    %213 = vector.multi_reduction <add>, %212, %cst_58 [1] : vector<8x32xf32> to vector<8xf32>
    %214 = vector.shape_cast %213 : vector<8xf32> to vector<8x1xf32>
    %215 = vector.broadcast %13 : vector<1x1xf32> to vector<8x1xf32>
    %216 = arith.addf %214, %215 : vector<8x1xf32>
    %217 = arith.addi %17, %21 : i32
    %218 = vector.broadcast %217 : i32 to vector<8x128xi32>
    %219 = arith.cmpi eq, %16, %218 : vector<8x128xi32>
    %cst_59 = arith.constant 0.000000e+00 : f32
    %220 = vector.shape_cast %216 : vector<8x1xf32> to vector<8x1xf32>
    %221 = vector.broadcast %220 : vector<8x1xf32> to vector<8x128xf32>
    %222 = vector.broadcast %cst_59 : f32 to vector<8x128xf32>
    %223 = arith.select %219, %221, %222 : vector<8x128xi1>, vector<8x128xf32>
    %cst_60 = arith.constant dense<0.000000e+00> : vector<128xf32>
    %224 = vector.multi_reduction <add>, %223, %cst_60 [0] : vector<8x128xf32> to vector<128xf32>
    %225 = vector.shape_cast %224 : vector<128xf32> to vector<1x128xf32>
    %226 = arith.addf %19, %225 : vector<1x128xf32>
    %c1_i32 = arith.constant 1 : i32
    %c0_61 = arith.constant 0 : index
    %c0_62 = arith.constant 0 : index
    %227 = vector.load %arg13[%c0_61, %c0_62] : memref<1x32xf32, #tpu.memory_space<vmem>>, vector<1x32xf32>
    tpu.vector_store %arg13[%c0_61, %c0_62], %208 {strides = array<i32>} : memref<1x32xf32, #tpu.memory_space<vmem>>, vector<1x32xf32>,
    %c0_63 = arith.constant 0 : index
    %c0_64 = arith.constant 0 : index
    %228 = vector.load %arg14[%c0_63, %c0_64] : memref<1x128xf32, #tpu.memory_space<vmem>>, vector<1x128xf32>
    tpu.vector_store %arg14[%c0_63, %c0_64], %226 {strides = array<i32>} : memref<1x128xf32, #tpu.memory_space<vmem>>, vector<1x128xf32>,
    %c2_i32 = arith.constant 2 : i32
    %229 = arith.cmpi eq, %arg0, %c2_i32 : i32
    %230 = arith.extui %229 : i1 to i32
    %c0_i32_65 = arith.constant 0 : i32
    %231 = arith.cmpi ne, %230, %c0_i32_65 : i32
    scf.if %231 {
      %c0_66 = arith.constant 0 : index
      %232 = memref.load %arg1[%c0_66] : memref<1xi32, #tpu.memory_space<smem>>
      %233 = tpu.iota {dimensions = array<i32: 1>} : vector<1x128xi32>
      %234 = vector.broadcast %232 : i32 to vector<1x128xi32>
      %235 = arith.cmpi slt, %233, %234 : vector<1x128xi32>
      %cst_67 = arith.constant 1.000000e+30 : f32
      %236 = vector.broadcast %cst_67 : f32 to vector<1x128xf32>
      %237 = arith.select %235, %226, %236 : vector<1x128xi1>, vector<1x128xf32>
      %cst_68 = arith.constant 0.000000e+00 : f32
      %238 = vector.broadcast %cst_68 : f32 to vector<1x128xf32>
      %239 = arith.select %235, %226, %238 : vector<1x128xi1>, vector<1x128xf32>
      %cst_69 = arith.constant 0.000000e+00 : f32
      %240 = vector.broadcast %cst_69 : f32 to vector<1x128xf32>
      %241 = arith.subf %240, %239 : vector<1x128xf32>
      %242 = math.exp %241 : vector<1x128xf32>
      %243 = tpu.iota {dimensions = array<i32: 0>} : vector<2x128xi32>
      %c0_i32_70 = arith.constant 0 : i32
      %244 = vector.broadcast %c0_i32_70 : i32 to vector<2x128xi32>
      %245 = arith.cmpi eq, %243, %244 : vector<2x128xi32>
      %246 = arith.mulf %239, %242 : vector<1x128xf32>
      %247 = vector.shape_cast %246 : vector<1x128xf32> to vector<1x128xf32>
      %248 = vector.broadcast %247 : vector<1x128xf32> to vector<2x128xf32>
      %249 = vector.shape_cast %242 : vector<1x128xf32> to vector<1x128xf32>
      %250 = vector.broadcast %249 : vector<1x128xf32> to vector<2x128xf32>
      %251 = arith.select %245, %248, %250 : vector<2x128xi1>, vector<2x128xf32>
      %cst_71 = arith.constant 0.000000e+00 : f32
      %252 = vector.shape_cast %235 : vector<1x128xi1> to vector<1x128xi1>
      %253 = vector.broadcast %252 : vector<1x128xi1> to vector<2x128xi1>
      %254 = vector.broadcast %cst_71 : f32 to vector<2x128xf32>
      %255 = arith.select %253, %251, %254 : vector<2x128xi1>, vector<2x128xf32>
      %c127_i32 = arith.constant 127 : i32
      %256 = tpu.dynamic_rotate %255 by %c127_i32 dim 1 : vector<2x128xf32>, i32 -> vector<2x128xf32>
      %257 = arith.addf %255, %256 : vector<2x128xf32>
      %c126_i32 = arith.constant 126 : i32
      %258 = tpu.dynamic_rotate %255 by %c126_i32 dim 1 : vector<2x128xf32>, i32 -> vector<2x128xf32>
      %259 = arith.addf %257, %258 : vector<2x128xf32>
      %c125_i32 = arith.constant 125 : i32
      %260 = tpu.dynamic_rotate %255 by %c125_i32 dim 1 : vector<2x128xf32>, i32 -> vector<2x128xf32>
      %261 = arith.addf %259, %260 : vector<2x128xf32>
      %c124_i32 = arith.constant 124 : i32
      %262 = tpu.dynamic_rotate %255 by %c124_i32 dim 1 : vector<2x128xf32>, i32 -> vector<2x128xf32>
      %263 = arith.addf %261, %262 : vector<2x128xf32>
      %c123_i32 = arith.constant 123 : i32
      %264 = tpu.dynamic_rotate %255 by %c123_i32 dim 1 : vector<2x128xf32>, i32 -> vector<2x128xf32>
      %265 = arith.addf %263, %264 : vector<2x128xf32>
      %c122_i32 = arith.constant 122 : i32
      %266 = tpu.dynamic_rotate %255 by %c122_i32 dim 1 : vector<2x128xf32>, i32 -> vector<2x128xf32>
      %267 = arith.addf %265, %266 : vector<2x128xf32>
      %c121_i32 = arith.constant 121 : i32
      %268 = tpu.dynamic_rotate %255 by %c121_i32 dim 1 : vector<2x128xf32>, i32 -> vector<2x128xf32>
      %269 = arith.addf %267, %268 : vector<2x128xf32>
      %c120_i32 = arith.constant 120 : i32
      %270 = tpu.dynamic_rotate %255 by %c120_i32 dim 1 : vector<2x128xf32>, i32 -> vector<2x128xf32>
      %271 = arith.addf %269, %270 : vector<2x128xf32>
      %c119_i32 = arith.constant 119 : i32
      %272 = tpu.dynamic_rotate %255 by %c119_i32 dim 1 : vector<2x128xf32>, i32 -> vector<2x128xf32>
      %273 = arith.addf %271, %272 : vector<2x128xf32>
      %c118_i32 = arith.constant 118 : i32
      %274 = tpu.dynamic_rotate %255 by %c118_i32 dim 1 : vector<2x128xf32>, i32 -> vector<2x128xf32>
      %275 = arith.addf %273, %274 : vector<2x128xf32>
      %c117_i32 = arith.constant 117 : i32
      %276 = tpu.dynamic_rotate %255 by %c117_i32 dim 1 : vector<2x128xf32>, i32 -> vector<2x128xf32>
      %277 = arith.addf %275, %276 : vector<2x128xf32>
      %c1_i32_72 = arith.constant 1 : i32
      %278 = tpu.dynamic_rotate %237 by %c1_i32_72 dim 1 : vector<1x128xf32>, i32 -> vector<1x128xf32>
      %279 = arith.minimumf %237, %278 : vector<1x128xf32>
      %c2_i32_73 = arith.constant 2 : i32
      %280 = tpu.dynamic_rotate %237 by %c2_i32_73 dim 1 : vector<1x128xf32>, i32 -> vector<1x128xf32>
      %281 = arith.minimumf %279, %280 : vector<1x128xf32>
      %c3_i32 = arith.constant 3 : i32
      %282 = tpu.dynamic_rotate %237 by %c3_i32 dim 1 : vector<1x128xf32>, i32 -> vector<1x128xf32>
      %283 = arith.minimumf %281, %282 : vector<1x128xf32>
      %c4_i32 = arith.constant 4 : i32
      %284 = tpu.dynamic_rotate %237 by %c4_i32 dim 1 : vector<1x128xf32>, i32 -> vector<1x128xf32>
      %285 = arith.minimumf %283, %284 : vector<1x128xf32>
      %c5_i32 = arith.constant 5 : i32
      %286 = tpu.dynamic_rotate %237 by %c5_i32 dim 1 : vector<1x128xf32>, i32 -> vector<1x128xf32>
      %287 = arith.minimumf %285, %286 : vector<1x128xf32>
      %c6_i32 = arith.constant 6 : i32
      %288 = tpu.dynamic_rotate %237 by %c6_i32 dim 1 : vector<1x128xf32>, i32 -> vector<1x128xf32>
      %289 = arith.minimumf %287, %288 : vector<1x128xf32>
      %c7_i32 = arith.constant 7 : i32
      %290 = tpu.dynamic_rotate %237 by %c7_i32 dim 1 : vector<1x128xf32>, i32 -> vector<1x128xf32>
      %291 = arith.minimumf %289, %290 : vector<1x128xf32>
      %c8_i32_74 = arith.constant 8 : i32
      %292 = tpu.dynamic_rotate %237 by %c8_i32_74 dim 1 : vector<1x128xf32>, i32 -> vector<1x128xf32>
      %293 = arith.minimumf %291, %292 : vector<1x128xf32>
      %c9_i32 = arith.constant 9 : i32
      %294 = tpu.dynamic_rotate %237 by %c9_i32 dim 1 : vector<1x128xf32>, i32 -> vector<1x128xf32>
      %295 = arith.minimumf %293, %294 : vector<1x128xf32>
      %c10_i32 = arith.constant 10 : i32
      %296 = tpu.dynamic_rotate %237 by %c10_i32 dim 1 : vector<1x128xf32>, i32 -> vector<1x128xf32>
      %297 = arith.minimumf %295, %296 : vector<1x128xf32>
      %c11_i32 = arith.constant 11 : i32
      %298 = tpu.dynamic_rotate %237 by %c11_i32 dim 1 : vector<1x128xf32>, i32 -> vector<1x128xf32>
      %299 = arith.minimumf %297, %298 : vector<1x128xf32>
      %300 = vector.extract_strided_slice %277 {offsets = [0, 0], sizes = [1, 128], strides = [1, 1]} : vector<2x128xf32> to vector<1x128xf32>
      %301 = vector.extract_strided_slice %277 {offsets = [1, 0], sizes = [1, 128], strides = [1, 1]} : vector<2x128xf32> to vector<1x128xf32>
      %cst_75 = arith.constant 1.000000e-30 : f32
      %302 = vector.broadcast %cst_75 : f32 to vector<1x128xf32>
      %303 = arith.maximumf %301, %302 : vector<1x128xf32>
      %304 = arith.divf %300, %303 : vector<1x128xf32>
      %cst_76 = arith.constant 5.000000e-01 : f32
      %305 = vector.broadcast %cst_76 : f32 to vector<1x128xf32>
      %306 = arith.mulf %305, %304 : vector<1x128xf32>
      %cst_77 = arith.constant 5.000000e-01 : f32
      %307 = vector.broadcast %cst_77 : f32 to vector<1x128xf32>
      %308 = arith.mulf %307, %299 : vector<1x128xf32>
      %309 = arith.addf %306, %308 : vector<1x128xf32>
      %cst_78 = arith.constant 0.000000e+00 : f32
      %310 = vector.broadcast %cst_78 : f32 to vector<1x128xf32>
      %311 = arith.select %235, %309, %310 : vector<1x128xi1>, vector<1x128xf32>
      %cst_79 = arith.constant dense<0.000000e+00> : vector<1xf32>
      %312 = vector.multi_reduction <add>, %311, %cst_79 [1] : vector<1x128xf32> to vector<1xf32>
      %313 = vector.shape_cast %312 : vector<1xf32> to vector<1x1xf32>
      %c0_80 = arith.constant 0 : index
      %c0_81 = arith.constant 0 : index
      %314 = vector.load %arg9[%c0_80, %c0_81] : memref<1x1xf32, #tpu.memory_space<vmem>>, vector<1x1xf32>
      %315 = arith.mulf %313, %314 : vector<1x1xf32>
      %c0_82 = arith.constant 0 : index
      %c0_83 = arith.constant 0 : index
      %316 = vector.load %arg10[%c0_82, %c0_83] : memref<1x1xf32, #tpu.memory_space<vmem>>, vector<1x1xf32>
      tpu.vector_store %arg10[%c0_82, %c0_83], %315 {strides = array<i32>} : memref<1x1xf32, #tpu.memory_space<vmem>>, vector<1x1xf32>,
    } else {
    }
    return
  }
  func.func @transform_0(%arg0: i32, %arg1: memref<1xi32, #tpu.memory_space<smem>>) -> (i32, i32) {
    %c0_i32 = arith.constant 0 : i32
    %c0_i32_0 = arith.constant 0 : i32
    return %arg0, %c0_i32 : i32, i32
  }
  func.func @transform_1(%arg0: i32, %arg1: memref<1xi32, #tpu.memory_space<smem>>) -> (i32, i32) {
    %c0_i32 = arith.constant 0 : i32
    %c0_i32_0 = arith.constant 0 : i32
    %c0_i32_1 = arith.constant 0 : i32
    return %c0_i32, %c0_i32_0 : i32, i32
  }
  func.func @transform_2(%arg0: i32, %arg1: memref<1xi32, #tpu.memory_space<smem>>) -> (i32, i32) {
    %c0_i32 = arith.constant 0 : i32
    %c0_i32_0 = arith.constant 0 : i32
    %c0_i32_1 = arith.constant 0 : i32
    return %c0_i32, %c0_i32_0 : i32, i32
  }
  func.func @transform_3(%arg0: i32, %arg1: memref<1xi32, #tpu.memory_space<smem>>) -> (i32, i32) {
    %c0_i32 = arith.constant 0 : i32
    %c0_i32_0 = arith.constant 0 : i32
    %c0_i32_1 = arith.constant 0 : i32
    return %c0_i32, %c0_i32_0 : i32, i32
  }
  func.func @transform_4(%arg0: i32, %arg1: memref<1xi32, #tpu.memory_space<smem>>) -> (i32, i32) {
    %c0_i32 = arith.constant 0 : i32
    %c0_i32_0 = arith.constant 0 : i32
    %c0_i32_1 = arith.constant 0 : i32
    return %c0_i32, %c0_i32_0 : i32, i32
  }
  func.func @transform_5(%arg0: i32, %arg1: memref<1xi32, #tpu.memory_space<smem>>) -> (i32, i32) {
    %c0_i32 = arith.constant 0 : i32
    %c0_i32_0 = arith.constant 0 : i32
    %c0_i32_1 = arith.constant 0 : i32
    return %c0_i32, %c0_i32_0 : i32, i32
  }
  func.func @transform_6(%arg0: i32, %arg1: memref<1xi32, #tpu.memory_space<smem>>) -> (i32, i32) {
    %c0_i32 = arith.constant 0 : i32
    %c0_i32_0 = arith.constant 0 : i32
    %c0_i32_1 = arith.constant 0 : i32
    return %c0_i32, %c0_i32_0 : i32, i32
  }
  func.func @transform_7(%arg0: i32, %arg1: memref<1xi32, #tpu.memory_space<smem>>) -> (i32, i32) {
    %c0_i32 = arith.constant 0 : i32
    %c0_i32_0 = arith.constant 0 : i32
    %c0_i32_1 = arith.constant 0 : i32
    return %c0_i32, %c0_i32_0 : i32, i32
  }
  func.func @transform_8(%arg0: i32, %arg1: memref<1xi32, #tpu.memory_space<smem>>) -> (i32, i32) {
    %c0_i32 = arith.constant 0 : i32
    %c0_i32_0 = arith.constant 0 : i32
    %c0_i32_1 = arith.constant 0 : i32
    return %c0_i32, %c0_i32_0 : i32, i32
  }
}

</mosaic_0001>

<llo_original>
// kernel: tpu_custom_call.1
$region0: #{tpu_custom_call.1}
  #allocation0 [shape = 'u32[]', space=smem, size = 0x4, offset = 0x4, fixed_abs, tag = 'smem constant byte address 0x4 - core index']
  #allocation1 [shape = 'u32[144,128]{1,0:T(1,128)}', space=vmem, size = 0x12000, scoped, tag = 'internal scratch']
  #allocation2 [shape = 'f32[8,96]{1,0:T(8,128)}', space=vmem, size = 0x1000, scoped, tag = 'scratch operand']
  #allocation3 [shape = 'f32[8,32]{1,0:T(8,128)}', space=vmem, size = 0x1000, scoped, tag = 'scratch operand']
  #allocation4 [shape = 'f32[1,32]{1,0:T(1,128)}', space=vmem, size = 0x200, scoped, tag = 'scratch operand']
  #allocation5 [shape = 'f32[1,128]{1,0:T(1,128)}', space=vmem, size = 0x200, scoped, tag = 'scratch operand']
  #allocation6 [shape = 's32[1]{0}', space=sflag, size = 0x4, scoped, tag = 'scoped memory for tpu_custom_call.1']
  #allocation7 [shape = 's32[1]{0:T(128)S(6)}', space=smem, size = 0x200, scoped, tag = 'prefetched SMEM operand 0']
  #allocation8 [shape = 'f32[1,1]{1,0:T(1,128)S(1)}', space=vmem, size = 0x200, scoped, tag = 'scoped memory for tpu_custom_call.1']
  #allocation9 [shape = 'f32[1,1]{1,0:T(1,128)S(1)}', space=vmem, size = 0x200, scoped, tag = 'scoped memory for tpu_custom_call.1']
  %s0 = inlined_call_operand.<no memory space> [shape: s32[1], index: 0, kind: input, shape index: {}]
  %s1 = inlined_call_operand.hbm [shape: f32[24,64], index: 1, kind: input, shape index: {}]
  %s2 = inlined_call_operand.hbm [shape: f32[64,96], index: 2, kind: input, shape index: {}]
  %s3 = inlined_call_operand.vmem [shape: f32[1,96], index: 3, kind: input, shape index: {}]
  %s4 = inlined_call_operand.hbm [shape: f32[32,96], index: 4, kind: input, shape index: {}]
  %s5 = inlined_call_operand.vmem [shape: f32[1,96], index: 5, kind: input, shape index: {}]
  %s6 = inlined_call_operand.vmem [shape: f32[1,32], index: 6, kind: input, shape index: {}]
  %s7 = inlined_call_operand.<no memory space> [shape: f32[1,1], index: 7, kind: input, shape index: {}]
  %s8 = inlined_call_operand.<no memory space> [shape: f32[1,1], index: 8, kind: input, shape index: {}]
  %s9 = inlined_call_operand.hbm [shape: f32[1,1], index: 9, kind: output, shape index: {}]
  %s10 = sld [smem:[#allocation0]]
  $region85: #{tpu_custom_call.1} parent=0
    _
  %s12 = ssub.s32 1, %s10
  %s13 = scalar_select 0, %s12, %s10
  %14 = sst [smem:[#allocation7]] %s0
  %v15 = vstv %s7
  %16 = vst [vmem:[#allocation8] sm:$0x1] %v15
  %v17 = vstv %s8
  %18 = vst [vmem:[#allocation9] sm:$0x1] %v17
  $region1: #{tpu_custom_call.1} parent=0
    #allocation10 [shape = 'u8[8192]{0}', space=vmem, size = 0x2000, scoped, tag = 'input window, operand 1']
    #allocation11 [shape = 's32[2]{0}', space=sflag, size = 0x8, scoped, tag = 'scoped memory for tpu_custom_call.1']
    #allocation12 [shape = 's32[2]{0}', space=sflag, size = 0x8, scoped, tag = 'scoped memory for tpu_custom_call.1']
    #allocation13 [shape = 'u8[32768]{0}', space=vmem, size = 0x8000, scoped, tag = 'input window, operand 2, single buffered']
    #allocation14 [shape = 's32[1]{0}', space=sflag, size = 0x4, scoped, tag = 'scoped memory for tpu_custom_call.1']
    #allocation15 [shape = 'u8[16384]{0}', space=vmem, size = 0x4000, scoped, tag = 'input window, operand 4, single buffered']
    #allocation16 [shape = 'u8[512]{0}', space=vmem, size = 0x400, scoped, tag = 'output window, operand 0, single buffered']
    %19 = vsyncpa [#allocation11], 0
    %s20 = scalar_lea.sflag [#allocation11], 1
    %21 = vsyncpa %s20, 0
    %22 = vsyncpa [#allocation14], 0
    %23 = vsyncpa [#allocation12], 0
    loop: start=0, step=1, limit=5
    $region2: #{tpu_custom_call.1} parent=1 // loop_pre_header
      _
    $region3: #{tpu_custom_call.1} parent=1 // loop_header
      %s25 = sphi 0, %s29
      %p26 = scmp.ge.s32.totalorder %s25, 5
      %s35 = sphi 0, %s37
      %s38 = sphi 0, %s35
      %s39 = sphi 0, %s38
      %s55 = sphi 0, %s39
      %s59 = sphi 0, %s59
      %s61 = sphi 0, %s59
      %s62 = sphi 0, %s61
      %s76 = sphi 0, %s62
      %s80 = sphi 0, %s80
      %s82 = sphi 0, %s80
      %s83 = sphi 0, %s82
      %s97 = sphi 0, %s83
      %s101 = sphi 0, %s101
      %s103 = sphi 0, %s101
      %s104 = sphi 0, %s103
      %s118 = sphi 0, %s104
      %s122 = sphi 0, %s122
      %s124 = sphi 0, %s122
      %s125 = sphi 0, %s124
      %s139 = sphi 0, %s125
      %s143 = sphi 0, %s143
      %s145 = sphi 0, %s143
      %s146 = sphi 0, %s145
      %s160 = sphi 0, %s146
      %s164 = sphi 0, %s164
      %s166 = sphi 0, %s164
      %s167 = sphi 0, %s166
      %s181 = sphi 0, %s167
      %s185 = sphi 0, %s185
      %s187 = sphi 0, %s185
      %s188 = sphi 0, %s187
      %s202 = sphi 0, %s188
      %s206 = sphi 0, %s206
      %s208 = sphi 0, %s206
      %s209 = sphi 0, %s208
      %s223 = sphi 0, %s209
    $region4: #{tpu_custom_call.1} parent=1 // loop_header_branch
      %28 = sbr.rel (%p26) target = $region8
    $region5: #{tpu_custom_call.1} parent=1 // loop_body
      %s30 = ssub.s32 %s25, 1
      %s31 = ssub.s32 %s25, 2
      %s32 = sadd.s32 %s25, 1
      %s33 = ssub.s32 %s25, %s32
      %p34 = scmp.eq.s32.totalorder %s33, 0
      %s36 = sadd.s32 %s35, 1
      %s37 = scalar_select %p34, %s35, %s36
      %p40 = pneg %p34
      %p41 = scmp.eq.s32.totalorder %s25, 2
      %p42 = por %p40, %p41
      %p43 = scmp.ne.s32.totalorder %s35, %s38
      %p44 = scmp.eq.s32.totalorder %s25, 0
      %p45 = por %p43, %p44
      %p46 = scmp.ne.s32.totalorder %s35, %s38
      %p47 = scmp.eq.s32.totalorder %s30, 2
      %p48 = por %p46, %p47
      %p49 = scmp.ne.s32.totalorder %s38, %s39
      %p50 = scmp.eq.s32.totalorder %s30, 0
      %p51 = por %p49, %p50
      %p52 = scmp.ne.s32.totalorder %s38, %s39
      %p53 = scmp.eq.s32.totalorder %s31, 2
      %p54 = por %p52, %p53
      %p56 = scmp.ne.s32.totalorder %s39, %s55
      %p57 = scmp.eq.s32.totalorder %s31, 0
      %p58 = por %p56, %p57
      %s60 = sadd.s32 %s59, 1
      %p63 = scmp.eq.s32.totalorder %s25, 2
      %p64 = scmp.ne.s32.totalorder %s59, %s61
      %p65 = scmp.eq.s32.totalorder %s25, 0
      %p66 = por %p64, %p65
      %p67 = scmp.ne.s32.totalorder %s59, %s61
      %p68 = scmp.eq.s32.totalorder %s30, 2
      %p69 = por %p67, %p68
      %p70 = scmp.ne.s32.totalorder %s61, %s62
      %p71 = scmp.eq.s32.totalorder %s30, 0
      %p72 = por %p70, %p71
      %p73 = scmp.ne.s32.totalorder %s61, %s62
      %p74 = scmp.eq.s32.totalorder %s31, 2
      %p75 = por %p73, %p74
      %p77 = scmp.ne.s32.totalorder %s62, %s76
      %p78 = scmp.eq.s32.totalorder %s31, 0
      %p79 = por %p77, %p78
      %s81 = sadd.s32 %s80, 1
      %p84 = scmp.eq.s32.totalorder %s25, 2
      %p85 = scmp.ne.s32.totalorder %s80, %s82
      %p86 = scmp.eq.s32.totalorder %s25, 0
      %p87 = por %p85, %p86
      %p88 = scmp.ne.s32.totalorder %s80, %s82
      %p89 = scmp.eq.s32.totalorder %s30, 2
      %p90 = por %p88, %p89
      %p91 = scmp.ne.s32.totalorder %s82, %s83
      %p92 = scmp.eq.s32.totalorder %s30, 0
      %p93 = por %p91, %p92
      %p94 = scmp.ne.s32.totalorder %s82, %s83
      %p95 = scmp.eq.s32.totalorder %s31, 2
      %p96 = por %p94, %p95
      %p98 = scmp.ne.s32.totalorder %s83, %s97
      %p99 = scmp.eq.s32.totalorder %s31, 0
      %p100 = por %p98, %p99
      %s102 = sadd.s32 %s101, 1
      %p105 = scmp.eq.s32.totalorder %s25, 2
      %p106 = scmp.ne.s32.totalorder %s101, %s103
      %p107 = scmp.eq.s32.totalorder %s25, 0
      %p108 = por %p106, %p107
      %p109 = scmp.ne.s32.totalorder %s101, %s103
      %p110 = scmp.eq.s32.totalorder %s30, 2
      %p111 = por %p109, %p110
      %p112 = scmp.ne.s32.totalorder %s103, %s104
      %p113 = scmp.eq.s32.totalorder %s30, 0
      %p114 = por %p112, %p113
      %p115 = scmp.ne.s32.totalorder %s103, %s104
      %p116 = scmp.eq.s32.totalorder %s31, 2
      %p117 = por %p115, %p116
      %p119 = scmp.ne.s32.totalorder %s104, %s118
      %p120 = scmp.eq.s32.totalorder %s31, 0
      %p121 = por %p119, %p120
      %s123 = sadd.s32 %s122, 1
      %p126 = scmp.eq.s32.totalorder %s25, 2
      %p127 = scmp.ne.s32.totalorder %s122, %s124
      %p128 = scmp.eq.s32.totalorder %s25, 0
      %p129 = por %p127, %p128
      %p130 = scmp.ne.s32.totalorder %s122, %s124
      %p131 = scmp.eq.s32.totalorder %s30, 2
      %p132 = por %p130, %p131
      %p133 = scmp.ne.s32.totalorder %s124, %s125
      %p134 = scmp.eq.s32.totalorder %s30, 0
      %p135 = por %p133, %p134
      %p136 = scmp.ne.s32.totalorder %s124, %s125
      %p137 = scmp.eq.s32.totalorder %s31, 2
      %p138 = por %p136, %p137
      %p140 = scmp.ne.s32.totalorder %s125, %s139
      %p141 = scmp.eq.s32.totalorder %s31, 0
      %p142 = por %p140, %p141
      %s144 = sadd.s32 %s143, 1
      %p147 = scmp.eq.s32.totalorder %s25, 2
      %p148 = scmp.ne.s32.totalorder %s143, %s145
      %p149 = scmp.eq.s32.totalorder %s25, 0
      %p150 = por %p148, %p149
      %p151 = scmp.ne.s32.totalorder %s143, %s145
      %p152 = scmp.eq.s32.totalorder %s30, 2
      %p153 = por %p151, %p152
      %p154 = scmp.ne.s32.totalorder %s145, %s146
      %p155 = scmp.eq.s32.totalorder %s30, 0
      %p156 = por %p154, %p155
      %p157 = scmp.ne.s32.totalorder %s145, %s146
      %p158 = scmp.eq.s32.totalorder %s31, 2
      %p159 = por %p157, %p158
      %p161 = scmp.ne.s32.totalorder %s146, %s160
      %p162 = scmp.eq.s32.totalorder %s31, 0
      %p163 = por %p161, %p162
      %s165 = sadd.s32 %s164, 1
      %p168 = scmp.eq.s32.totalorder %s25, 2
      %p169 = scmp.ne.s32.totalorder %s164, %s166
      %p170 = scmp.eq.s32.totalorder %s25, 0
      %p171 = por %p169, %p170
      %p172 = scmp.ne.s32.totalorder %s164, %s166
      %p173 = scmp.eq.s32.totalorder %s30, 2
      %p174 = por %p172, %p173
      %p175 = scmp.ne.s32.totalorder %s166, %s167
      %p176 = scmp.eq.s32.totalorder %s30, 0
      %p177 = por %p175, %p176
      %p178 = scmp.ne.s32.totalorder %s166, %s167
      %p179 = scmp.eq.s32.totalorder %s31, 2
      %p180 = por %p178, %p179
      %p182 = scmp.ne.s32.totalorder %s167, %s181
      %p183 = scmp.eq.s32.totalorder %s31, 0
      %p184 = por %p182, %p183
      %s186 = sadd.s32 %s185, 1
      %p189 = scmp.eq.s32.totalorder %s25, 2
      %p190 = scmp.ne.s32.totalorder %s185, %s187
      %p191 = scmp.eq.s32.totalorder %s25, 0
      %p192 = por %p190, %p191
      %p193 = scmp.ne.s32.totalorder %s185, %s187
      %p194 = scmp.eq.s32.totalorder %s30, 2
      %p195 = por %p193, %p194
      %p196 = scmp.ne.s32.totalorder %s187, %s188
      %p197 = scmp.eq.s32.totalorder %s30, 0
      %p198 = por %p196, %p197
      %p199 = scmp.ne.s32.totalorder %s187, %s188
      %p200 = scmp.eq.s32.totalorder %s31, 2
      %p201 = por %p199, %p200
      %p203 = scmp.ne.s32.totalorder %s188, %s202
      %p204 = scmp.eq.s32.totalorder %s31, 0
      %p205 = por %p203, %p204
      %s207 = sadd.s32 %s206, 1
      %p210 = scmp.eq.s32.totalorder %s25, 2
      %p211 = scmp.ne.s32.totalorder %s206, %s208
      %p212 = scmp.eq.s32.totalorder %s25, 0
      %p213 = por %p211, %p212
      %p214 = scmp.ne.s32.totalorder %s206, %s208
      %p215 = scmp.eq.s32.totalorder %s30, 2
      %p216 = por %p214, %p215
      %p217 = scmp.ne.s32.totalorder %s208, %s209
      %p218 = scmp.eq.s32.totalorder %s30, 0
      %p219 = por %p217, %p218
      %p220 = scmp.ne.s32.totalorder %s208, %s209
      %p221 = scmp.eq.s32.totalorder %s31, 2
      %p222 = por %p220, %p221
      %p224 = scmp.ne.s32.totalorder %s209, %s223
      %p225 = scmp.eq.s32.totalorder %s31, 0
      %p226 = por %p224, %p225
      %p227 = scmp.le.s32.totalorder 1, %s25
      %p228 = scmp.lt.s32.totalorder %s25, 4
      %p229 = pnand %p227, %p228
      %p230 = pneg %p229
      // Predicated region
      $region9: #{tpu_custom_call.1} parent=5 // pred_check
        _
      $region10: #{tpu_custom_call.1} parent=5 // pred_check_branch
        %232 = sbr.rel (%p229) target = $region12
      $region11: #{tpu_custom_call.1} parent=5 // pred_region
        %s233 = ssub.s32 %s25, 1
        // Predicated region
        $region13: #{tpu_custom_call.1} parent=11 // pred_check
          %p234 = pneg %p72
        $region14: #{tpu_custom_call.1} parent=11 // pred_check_branch
          %236 = sbr.rel (%p234) target = $region16
        $region15: #{tpu_custom_call.1} parent=11 // pred_region
          %s238 = ssub.s32 1024, 1024
          %239 = vsyncadd [#allocation14], %s238
          %s240 = sshll.u32 [#allocation13], 4
          %s241 = int_to_ptr.vmem [resolvable:$true] %s240
          %246 = dma.hbm_to_vmem [thread:$0]  %s2, 1024, %s241, [#allocation14], 128, 128, 8
        $region16: #{tpu_custom_call.1} parent=11 // pred_fallthru
          _
        // Predicated region
        $region17: #{tpu_custom_call.1} parent=11 // pred_check
          %p247 = pneg %p93
        $region18: #{tpu_custom_call.1} parent=11 // pred_check_branch
          %249 = sbr.rel (%p247) target = $region20
        $region19: #{tpu_custom_call.1} parent=11 // pred_region
          _
        $region20: #{tpu_custom_call.1} parent=11 // pred_fallthru
          _
        // Predicated region
        $region21: #{tpu_custom_call.1} parent=11 // pred_check
          %p250 = pneg %p114
        $region22: #{tpu_custom_call.1} parent=11 // pred_check_branch
          %252 = sbr.rel (%p250) target = $region24
        $region23: #{tpu_custom_call.1} parent=11 // pred_region
          %s254 = ssub.s32 512, 512
          %255 = vsyncadd [#allocation14], %s254
          %s256 = sshll.u32 [#allocation15], 4
          %s257 = int_to_ptr.vmem [resolvable:$true] %s256
          %262 = dma.hbm_to_vmem [thread:$0]  %s4, 512, %s257, [#allocation14], 128, 128, 8
        $region24: #{tpu_custom_call.1} parent=11 // pred_fallthru
          _
        // Predicated region
        $region25: #{tpu_custom_call.1} parent=11 // pred_check
          %p263 = pneg %p135
        $region26: #{tpu_custom_call.1} parent=11 // pred_check_branch
          %265 = sbr.rel (%p263) target = $region28
        $region27: #{tpu_custom_call.1} parent=11 // pred_region
          _
        $region28: #{tpu_custom_call.1} parent=11 // pred_fallthru
          _
        // Predicated region
        $region29: #{tpu_custom_call.1} parent=11 // pred_check
          %p266 = pneg %p156
        $region30: #{tpu_custom_call.1} parent=11 // pred_check_branch
          %268 = sbr.rel (%p266) target = $region32
        $region31: #{tpu_custom_call.1} parent=11 // pred_region
          _
        $region32: #{tpu_custom_call.1} parent=11 // pred_fallthru
          _
        // Predicated region
        $region33: #{tpu_custom_call.1} parent=11 // pred_check
          %p269 = pneg %p177
        $region34: #{tpu_custom_call.1} parent=11 // pred_check_branch
          %271 = sbr.rel (%p269) target = $region36
        $region35: #{tpu_custom_call.1} parent=11 // pred_region
          _
        $region36: #{tpu_custom_call.1} parent=11 // pred_fallthru
          _
        // Predicated region
        $region37: #{tpu_custom_call.1} parent=11 // pred_check
          %p272 = pneg %p198
        $region38: #{tpu_custom_call.1} parent=11 // pred_check_branch
          %274 = sbr.rel (%p272) target = $region40
        $region39: #{tpu_custom_call.1} parent=11 // pred_region
          _
        $region40: #{tpu_custom_call.1} parent=11 // pred_fallthru
          _
      $region12: #{tpu_custom_call.1} parent=5 // pred_fallthru
        _
      %p275 = scmp.lt.s32.totalorder %s25, 3
      // Predicated region
      $region41: #{tpu_custom_call.1} parent=5 // pred_check
        %p276 = pneg %p275
      $region42: #{tpu_custom_call.1} parent=5 // pred_check_branch
        %278 = sbr.rel (%p276) target = $region44
      $region43: #{tpu_custom_call.1} parent=5 // pred_region
        // Predicated region
        $region45: #{tpu_custom_call.1} parent=43 // pred_check
          %p279 = pneg %p45
        $region46: #{tpu_custom_call.1} parent=43 // pred_check_branch
          %281 = sbr.rel (%p279) target = $region48
        $region47: #{tpu_custom_call.1} parent=43 // pred_region
          %s282 = sand.u32 %s35, 1
          %s283 = scalar_lea.sflag [#allocation11], %s282
          %s284 = sand.u32 %s35, 1
          %s285 = smul.addr %s284, 8
          %s286 = scalar_lea.vmem [#allocation10], %s285
          %s288 = ssub.s32 128, 128
          %289 = vsyncadd %s283, %s288
          %s290 = smul.addr %s25, 128
          %s291 = scalar_lea.hbm %s1, %s290
          %s293 = sshll.u32 %s286, 4
          %s294 = int_to_ptr.vmem [resolvable:$true] %s293
          %296 = dma.hbm_to_vmem [thread:$0]  %s291, 128, %s294, %s283
        $region48: #{tpu_custom_call.1} parent=43 // pred_fallthru
          _
      $region44: #{tpu_custom_call.1} parent=5 // pred_fallthru
        _
      %p297 = scmp.le.s32.totalorder 1, %s25
      %p298 = scmp.lt.s32.totalorder %s25, 4
      %p299 = pnand %p297, %p298
      %p300 = pneg %p299
      // Predicated region
      $region49: #{tpu_custom_call.1} parent=5 // pred_check
        _
      $region50: #{tpu_custom_call.1} parent=5 // pred_check_branch
        %302 = sbr.rel (%p299) target = $region52
      $region51: #{tpu_custom_call.1} parent=5 // pred_region
        %s303 = ssub.s32 %s25, 1
        %s304 = sand.u32 %s38, 1
        %s305 = scalar_lea.sflag [#allocation11], %s304
        %s306 = sand.u32 %s38, 1
        %s307 = smul.addr %s306, 8
        %s308 = scalar_lea.vmem [#allocation10], %s307
        // Predicated region
        $region53: #{tpu_custom_call.1} parent=51 // pred_check
          %p309 = pneg %p51
        $region54: #{tpu_custom_call.1} parent=51 // pred_check_branch
          %311 = sbr.rel (%p309) target = $region56
        $region55: #{tpu_custom_call.1} parent=51 // pred_region
          %312 = dma.done %s305, 128
        $region56: #{tpu_custom_call.1} parent=51 // pred_fallthru
          _
        // Predicated region
        $region57: #{tpu_custom_call.1} parent=51 // pred_check
          %p313 = pneg %p72
        $region58: #{tpu_custom_call.1} parent=51 // pred_check_branch
          %315 = sbr.rel (%p313) target = $region60
        $region59: #{tpu_custom_call.1} parent=51 // pred_region
          %316 = dma.done [#allocation14], 1024
        $region60: #{tpu_custom_call.1} parent=51 // pred_fallthru
          _
        // Predicated region
        $region61: #{tpu_custom_call.1} parent=51 // pred_check
          %p317 = pneg %p114
        $region62: #{tpu_custom_call.1} parent=51 // pred_check_branch
          %319 = sbr.rel (%p317) target = $region64
        $region63: #{tpu_custom_call.1} parent=51 // pred_region
          %320 = dma.done [#allocation14], 512
        $region64: #{tpu_custom_call.1} parent=51 // pred_fallthru
          _
        %s321 = sand.u32 %s38, 1
        %s322 = scalar_lea.sflag [#allocation11], %s321
        %s323 = sand.u32 %s38, 1
        %s324 = smul.addr %s323, 8
        %s325 = scalar_lea.vmem [#allocation10], %s324
        %p326 = pneg %p51
        %p327 = pneg %p48
        %p328 = pneg %p72
        %p329 = pneg %p69
        %p330 = pneg %p93
        %p331 = pneg %p90
        %p332 = pneg %p114
        %p333 = pneg %p111
        %p334 = pneg %p135
        %p335 = pneg %p132
        %p336 = pneg %p156
        %p337 = pneg %p153
        %p338 = pneg %p177
        %p339 = pneg %p174
        %p340 = pneg %p198
        %p341 = pneg %p195
        %p342 = pneg %p219
        %p343 = pneg %p216
        %p344 = scmp.eq.s32.totalorder %s30, 0
        // Predicated region
        $region65: #{tpu_custom_call.1} parent=51 // pred_check
          %p345 = pneg %p344
        $region66: #{tpu_custom_call.1} parent=51 // pred_check_branch
          %347 = sbr.rel (%p345) target = $region68
        $region67: #{tpu_custom_call.1} parent=51 // pred_region
          %vm348 = vcmask 253952
          %349 = vst.msk [vmem:[#allocation4] sm:$0x1] %vm348, 0.0
          %350 = vst [vmem:[#allocation5] sm:$0x1] 0.0
        $region68: #{tpu_custom_call.1} parent=51 // pred_fallthru
          _
        %v351 = vld [vmem:[%s308] sm:$0xff]
        %v352 = vld [vmem:[#allocation13] sm:$0xff]
        %v353 = vld [vmem:[#allocation13 + $0x8] sm:$0xff]
        %v354 = vld [vmem:[#allocation13 + $0x10] sm:$0xff]
        %v355 = vld [vmem:[#allocation13 + $0x18] sm:$0xff]
        %v356 = vld [vmem:[#allocation13 + $0x20] sm:$0xff]
        %v357 = vld [vmem:[#allocation13 + $0x28] sm:$0xff]
        %v358 = vld [vmem:[#allocation13 + $0x30] sm:$0xff]
        %v359 = vld [vmem:[#allocation13 + $0x38] sm:$0xff]
        %v360 = vld [vmem:[%s3] sm:$0x1]
        %v362 = vlaneseq
        %v363 = vshrl.u32 %v362, 7
        %v364 = vsub.s32 0, %v363
        %v365 = vrot.slane %v360, %v364
        %vm367 = vcmask 523264
        %v369 = vsel %vm367, %v351, 0
        %371 = vmatprep.subr.mxu0 0.0
        %372 = vmatpush1.msra.mxu0 %v352
        %373 = vmatprep.subr.mxu0 0.0
        %374 = vmatpush1.msra.mxu0 %v353
        %375 = vmatprep.subr.mxu0 0.0
        %376 = vmatpush1.msra.mxu0 %v354
        %377 = vmatprep.subr.mxu0 0.0
        %378 = vmatpush1.msra.mxu0 %v355
        %379 = vmatprep.subr.mxu0 0.0
        %380 = vmatpush1.msra.mxu0 %v356
        %381 = vmatprep.subr.mxu0 0.0
        %382 = vmatpush1.msra.mxu0 %v357
        %383 = vmatprep.subr.mxu0 0.0
        %384 = vmatpush1.msra.mxu0 %v358
        %385 = vmatprep.subr.mxu0 0.0
        %386 = vmatpush1.msra.mxu0 %v359
        %387 = vmatprep.subr.mxu0 0.0
        %388 = vmatpush1.msra.mxu0 0.0
        %389 = vmatprep.subr.mxu0 0.0
        %390 = vmatpush1.msra.mxu0 0.0
        %391 = vmatprep.subr.mxu0 0.0
        %392 = vmatpush1.msra.mxu0 0.0
        %393 = vmatprep.subr.mxu0 0.0
        %394 = vmatpush1.msra.mxu0 0.0
        %395 = vmatprep.subr.mxu0 0.0
        %396 = vmatpush1.msra.mxu0 0.0
        %397 = vmatprep.subr.mxu0 0.0
        %398 = vmatpush1.msra.mxu0 0.0
        %399 = vmatprep.subr.mxu0 0.0
        %400 = vmatpush1.msra.mxu0 0.0
        %401 = vmatprep.subr.mxu0 0.0
        %402 = vmatpush1.msra.mxu0 0.0
        %403 = vmatprep.subr.mxu0 0.0
        %404 = vmatpush1.msra.mxu0 0.0
        %405 = vmatprep.subr.mxu0 0.0
        %406 = vmatpush1.msra.mxu0 0.0
        %407 = vmatprep.subr.mxu0 0.0
        %408 = vmatpush1.msra.mxu0 0.0
        %409 = vmatprep.subr.mxu0 0.0
        %410 = vmatpush1.msra.mxu0 0.0
        %411 = vmatprep.subr.mxu0 0.0
        %412 = vmatpush1.msra.mxu0 0.0
        %413 = vmatprep.subr.mxu0 0.0
        %414 = vmatpush1.msra.mxu0 0.0
        %415 = vmatprep.subr.mxu0 0.0
        %416 = vmatpush1.msra.mxu0 0.0
        %417 = vmatprep.subr.mxu0 0.0
        %418 = vmatpush1.msra.mxu0 0.0
        %419 = vmatprep.subr.mxu0 0.0
        %420 = vmatpush1.msra.mxu0 0.0
        %421 = vmatprep.subr.mxu0 0.0
        %422 = vmatpush1.msra.mxu0 0.0
        %423 = vmatprep.subr.mxu0 0.0
        %424 = vmatpush1.msra.mxu0 0.0
        %425 = vmatprep.subr.mxu0 0.0
        %426 = vmatpush1.msra.mxu0 0.0
        %427 = vmatprep.subr.mxu0 0.0
        %428 = vmatpush1.msra.mxu0 0.0
        %429 = vmatprep.subr.mxu0 0.0
        %430 = vmatpush1.msra.mxu0 0.0
        %431 = vmatprep.subr.mxu0 0.0
        %432 = vmatpush1.msra.mxu0 0.0
        %433 = vmatprep.subr.mxu0 0.0
        %434 = vmatpush1.msra.mxu0 0.0
        %435 = vmatprep.mubr.f32.mxu0 0.0
        %436 = vmatmul.mubr.f32.gmra.mrb[0].mxu0 %v369
        %v437 = vpop.f32.mrb[0].mxu0
        %v438 = vadd.f32 %v365, %v437
        %v439 = vpop.f32.mrb[0].mxu0
        %440 = vdwg.mxu0
        %vm441 = vcmask 785408
        %442 = vst.msk [vmem:[#allocation2] sm:$0xff] %vm441, %v438
        %v443 = vld [vmem:[#allocation15] sm:$0xff]
        %v444 = vld [vmem:[#allocation15 + $0x8] sm:$0xff]
        %v445 = vld [vmem:[#allocation15 + $0x10] sm:$0xff]
        %v446 = vld [vmem:[#allocation15 + $0x18] sm:$0xff]
        %v447 = vld [vmem:[%s5] sm:$0x1]
        %v448 = vld [vmem:[%s6] sm:$0x1]
        %v449 = vld [vmem:[#allocation8] sm:$0x1]
        %v450 = vlaneseq
        %v451 = vand.u32 %v450, 127
        %v452 = vlaneseq
        %v453 = vshrl.u32 %v452, 7
        %v454 = vsub.s32 %v451, %v453
        %s455 = smul.u32 %s30, 8
        %v456 = vld [vmem:[#allocation4] sm:$0x1]
        %v457 = vld [vmem:[#allocation5] sm:$0x1]
        %v458 = vld [vmem:[#allocation2] sm:$0xff]
        %vm459 = vcmask 261120
        %v461 = vsel %vm459, %v456, 0
        %463 = vmatprep.subr.mxu0 0.0
        %464 = vmatpush1.msra.mxu0 %v443
        %465 = vmatprep.subr.mxu0 0.0
        %466 = vmatpush1.msra.mxu0 %v444
        %467 = vmatprep.subr.mxu0 0.0
        %468 = vmatpush1.msra.mxu0 %v445
        %469 = vmatprep.subr.mxu0 0.0
        %470 = vmatpush1.msra.mxu0 %v446
        %471 = vmatprep.subr.mxu0 0.0
        %472 = vmatpush1.msra.mxu0 0.0
        %473 = vmatprep.subr.mxu0 0.0
        %474 = vmatpush1.msra.mxu0 0.0
        %475 = vmatprep.subr.mxu0 0.0
        %476 = vmatpush1.msra.mxu0 0.0
        %477 = vmatprep.subr.mxu0 0.0
        %478 = vmatpush1.msra.mxu0 0.0
        %479 = vmatprep.subr.mxu0 0.0
        %480 = vmatpush1.msra.mxu0 0.0
        %481 = vmatprep.subr.mxu0 0.0
        %482 = vmatpush1.msra.mxu0 0.0
        %483 = vmatprep.subr.mxu0 0.0
        %484 = vmatpush1.msra.mxu0 0.0
        %485 = vmatprep.subr.mxu0 0.0
        %486 = vmatpush1.msra.mxu0 0.0
        %487 = vmatprep.subr.mxu0 0.0
        %488 = vmatpush1.msra.mxu0 0.0
        %489 = vmatprep.subr.mxu0 0.0
        %490 = vmatpush1.msra.mxu0 0.0
        %491 = vmatprep.subr.mxu0 0.0
        %492 = vmatpush1.msra.mxu0 0.0
        %493 = vmatprep.subr.mxu0 0.0
        %494 = vmatpush1.msra.mxu0 0.0
        %495 = vmatprep.subr.mxu0 0.0
        %496 = vmatpush1.msra.mxu0 0.0
        %497 = vmatprep.subr.mxu0 0.0
        %498 = vmatpush1.msra.mxu0 0.0
        %499 = vmatprep.subr.mxu0 0.0
        %500 = vmatpush1.msra.mxu0 0.0
        %501 = vmatprep.subr.mxu0 0.0
        %502 = vmatpush1.msra.mxu0 0.0
        %503 = vmatprep.subr.mxu0 0.0
        %504 = vmatpush1.msra.mxu0 0.0
        %505 = vmatprep.subr.mxu0 0.0
        %506 = vmatpush1.msra.mxu0 0.0
        %507 = vmatprep.subr.mxu0 0.0
        %508 = vmatpush1.msra.mxu0 0.0
        %509 = vmatprep.subr.mxu0 0.0
        %510 = vmatpush1.msra.mxu0 0.0
        %511 = vmatprep.subr.mxu0 0.0
        %512 = vmatpush1.msra.mxu0 0.0
        %513 = vmatprep.subr.mxu0 0.0
        %514 = vmatpush1.msra.mxu0 0.0
        %515 = vmatprep.subr.mxu0 0.0
        %516 = vmatpush1.msra.mxu0 0.0
        %517 = vmatprep.subr.mxu0 0.0
        %518 = vmatpush1.msra.mxu0 0.0
        %519 = vmatprep.subr.mxu0 0.0
        %520 = vmatpush1.msra.mxu0 0.0
        %521 = vmatprep.subr.mxu0 0.0
        %522 = vmatpush1.msra.mxu0 0.0
        %523 = vmatprep.subr.mxu0 0.0
        %524 = vmatpush1.msra.mxu0 0.0
        %525 = vmatprep.subr.mxu0 0.0
        %526 = vmatpush1.msra.mxu0 0.0
        %527 = vmatprep.mubr.f32.mxu0 0.0
        %528 = vmatmul.mubr.f32.gmra.mrb[0].mxu0 %v461
        %v529 = vpop.f32.mrb[0].mxu0
        %v530 = vadd.f32 %v447, %v529
        %v531 = vpop.f32.mrb[0].mxu0
        %532 = vdwg.mxu0
        %v533 = vadd.f32 %v458, %v530
        %v534 = vxor.u32 %v533, 2147483648
        %v535 = vmul.f32 %v534, 1.442695
        %v536 = vpow.pop %v535
        %v537 = vadd.f32 %v536, 1.0
        %v538 = vrcp.pop %v537
        %v539 = vmul.f32 1.0, %v538
        %541 = vrot.lane.b32.xlu0 %v530, 64
        %v542 = vpop.permute.xlu0 %541
        %v544 = vmul.f32 %v539, %v542
        %546 = vrot.lane.b32.xlu0 %v544, 64
        %v547 = vpop.permute.xlu0 %546
        %v549 = vadd.f32 %v458, %v547
        %v550 = vtanh.pop %v549
        %v551 = vsub.f32 1.0, %v539
        %553 = vrot.lane.b32.xlu0 %v550, 96
        %v554 = vpop.permute.xlu0 %553
        %v556 = vmul.f32 %v551, %v554
        %v557 = vlaneseq
        %v558 = vshrl.u32 %v557, 7
        %v559 = vsub.s32 0, %v558
        %v560 = vrot.slane %v456, %v559
        %561 = vrot.lane.b32.xlu0 %v560, 32
        %v562 = vpop.permute.xlu0 %561
        %v564 = vmul.f32 %v539, %v562
        %v565 = vadd.f32 %v556, %v564
        %567 = vrot.lane.b32.xlu0 %v565, 96
        %v568 = vpop.permute.xlu0 %567
        %vm570 = vcmask 253952
        %571 = vst.msk [vmem:[#allocation3] sm:$0x1] %vm570, %v568
        %v572 = vsel %vm459, %v568, 0
        %574 = vmatprep.subr.mxu0 0.0
        %575 = vmatpush1.msra.mxu0 %v443
        %576 = vmatprep.subr.mxu0 0.0
        %577 = vmatpush1.msra.mxu0 %v444
        %578 = vmatprep.subr.mxu0 0.0
        %579 = vmatpush1.msra.mxu0 %v445
        %580 = vmatprep.subr.mxu0 0.0
        %581 = vmatpush1.msra.mxu0 %v446
        %582 = vmatprep.subr.mxu0 0.0
        %583 = vmatpush1.msra.mxu0 0.0
        %584 = vmatprep.subr.mxu0 0.0
        %585 = vmatpush1.msra.mxu0 0.0
        %586 = vmatprep.subr.mxu0 0.0
        %587 = vmatpush1.msra.mxu0 0.0
        %588 = vmatprep.subr.mxu0 0.0
        %589 = vmatpush1.msra.mxu0 0.0
        %590 = vmatprep.subr.mxu0 0.0
        %591 = vmatpush1.msra.mxu0 0.0
        %592 = vmatprep.subr.mxu0 0.0
        %593 = vmatpush1.msra.mxu0 0.0
        %594 = vmatprep.subr.mxu0 0.0
        %595 = vmatpush1.msra.mxu0 0.0
        %596 = vmatprep.subr.mxu0 0.0
        %597 = vmatpush1.msra.mxu0 0.0
        %598 = vmatprep.subr.mxu0 0.0
        %599 = vmatpush1.msra.mxu0 0.0
        %600 = vmatprep.subr.mxu0 0.0
        %601 = vmatpush1.msra.mxu0 0.0
        %602 = vmatprep.subr.mxu0 0.0
        %603 = vmatpush1.msra.mxu0 0.0
        %604 = vmatprep.subr.mxu0 0.0
        %605 = vmatpush1.msra.mxu0 0.0
        %606 = vmatprep.subr.mxu0 0.0
        %607 = vmatpush1.msra.mxu0 0.0
        %608 = vmatprep.subr.mxu0 0.0
        %609 = vmatpush1.msra.mxu0 0.0
        %610 = vmatprep.subr.mxu0 0.0
        %611 = vmatpush1.msra.mxu0 0.0
        %612 = vmatprep.subr.mxu0 0.0
        %613 = vmatpush1.msra.mxu0 0.0
        %614 = vmatprep.subr.mxu0 0.0
        %615 = vmatpush1.msra.mxu0 0.0
        %616 = vmatprep.subr.mxu0 0.0
        %617 = vmatpush1.msra.mxu0 0.0
        %618 = vmatprep.subr.mxu0 0.0
        %619 = vmatpush1.msra.mxu0 0.0
        %620 = vmatprep.subr.mxu0 0.0
        %621 = vmatpush1.msra.mxu0 0.0
        %622 = vmatprep.subr.mxu0 0.0
        %623 = vmatpush1.msra.mxu0 0.0
        %624 = vmatprep.subr.mxu0 0.0
        %625 = vmatpush1.msra.mxu0 0.0
        %626 = vmatprep.subr.mxu0 0.0
        %627 = vmatpush1.msra.mxu0 0.0
        %628 = vmatprep.subr.mxu0 0.0
        %629 = vmatpush1.msra.mxu0 0.0
        %630 = vmatprep.subr.mxu0 0.0
        %631 = vmatpush1.msra.mxu0 0.0
        %632 = vmatprep.subr.mxu0 0.0
        %633 = vmatpush1.msra.mxu0 0.0
        %634 = vmatprep.subr.mxu0 0.0
        %635 = vmatpush1.msra.mxu0 0.0
        %636 = vmatprep.subr.mxu0 0.0
        %637 = vmatpush1.msra.mxu0 0.0
        %638 = vmatprep.mubr.f32.mxu0 0.0
        %639 = vmatmul.mubr.f32.gmra.mrb[0].mxu0 %v572
        %v640 = vpop.f32.mrb[0].mxu0
        %v641 = vadd.f32 %v447, %v640
        %v642 = vpop.f32.mrb[0].mxu0
        %643 = vdwg.mxu0
        %v645 = vrot.slane %v641, 7
        %v647 = vadd.f32 %v458, %v645
        %v648 = vxor.u32 %v647, 2147483648
        %v649 = vmul.f32 %v648, 1.442695
        %v650 = vpow.pop %v649
        %v651 = vadd.f32 %v650, 1.0
        %v652 = vrcp.pop %v651
        %v653 = vmul.f32 1.0, %v652
        %654 = vrot.lane.b32.xlu0 %v645, 64
        %v655 = vpop.permute.xlu0 %654
        %v657 = vmul.f32 %v653, %v655
        %659 = vrot.lane.b32.xlu0 %v657, 64
        %v660 = vpop.permute.xlu0 %659
        %v662 = vadd.f32 %v458, %v660
        %v663 = vtanh.pop %v662
        %v664 = vsub.f32 1.0, %v653
        %666 = vrot.lane.b32.xlu0 %v663, 96
        %v667 = vpop.permute.xlu0 %666
        %v669 = vmul.f32 %v664, %v667
        %v670 = vrot.slane %v565, 7
        %v672 = vmul.f32 %v653, %v670
        %v673 = vadd.f32 %v669, %v672
        %675 = vrot.lane.b32.xlu0 %v673, 96
        %v676 = vpop.permute.xlu0 %675
        %vm678 = vcmask 254977
        %679 = vst.msk [vmem:[#allocation3] sm:$0x2] %vm678, %v676
        %v680 = vrot.slane %v673, 1
        %681 = vrot.lane.b32.xlu0 %v680, 96
        %v682 = vpop.permute.xlu0 %681
        %v683 = vsel %vm459, %v682, 0
        %685 = vmatprep.subr.mxu0 0.0
        %686 = vmatpush1.msra.mxu0 %v443
        %687 = vmatprep.subr.mxu0 0.0
        %688 = vmatpush1.msra.mxu0 %v444
        %689 = vmatprep.subr.mxu0 0.0
        %690 = vmatpush1.msra.mxu0 %v445
        %691 = vmatprep.subr.mxu0 0.0
        %692 = vmatpush1.msra.mxu0 %v446
        %693 = vmatprep.subr.mxu0 0.0
        %694 = vmatpush1.msra.mxu0 0.0
        %695 = vmatprep.subr.mxu0 0.0
        %696 = vmatpush1.msra.mxu0 0.0
        %697 = vmatprep.subr.mxu0 0.0
        %698 = vmatpush1.msra.mxu0 0.0
        %699 = vmatprep.subr.mxu0 0.0
        %700 = vmatpush1.msra.mxu0 0.0
        %701 = vmatprep.subr.mxu0 0.0
        %702 = vmatpush1.msra.mxu0 0.0
        %703 = vmatprep.subr.mxu0 0.0
        %704 = vmatpush1.msra.mxu0 0.0
        %705 = vmatprep.subr.mxu0 0.0
        %706 = vmatpush1.msra.mxu0 0.0
        %707 = vmatprep.subr.mxu0 0.0
        %708 = vmatpush1.msra.mxu0 0.0
        %709 = vmatprep.subr.mxu0 0.0
        %710 = vmatpush1.msra.mxu0 0.0
        %711 = vmatprep.subr.mxu0 0.0
        %712 = vmatpush1.msra.mxu0 0.0
        %713 = vmatprep.subr.mxu0 0.0
        %714 = vmatpush1.msra.mxu0 0.0
        %715 = vmatprep.subr.mxu0 0.0
        %716 = vmatpush1.msra.mxu0 0.0
        %717 = vmatprep.subr.mxu0 0.0
        %718 = vmatpush1.msra.mxu0 0.0
        %719 = vmatprep.subr.mxu0 0.0
        %720 = vmatpush1.msra.mxu0 0.0
        %721 = vmatprep.subr.mxu0 0.0
        %722 = vmatpush1.msra.mxu0 0.0
        %723 = vmatprep.subr.mxu0 0.0
        %724 = vmatpush1.msra.mxu0 0.0
        %725 = vmatprep.subr.mxu0 0.0
        %726 = vmatpush1.msra.mxu0 0.0
        %727 = vmatprep.subr.mxu0 0.0
        %728 = vmatpush1.msra.mxu0 0.0
        %729 = vmatprep.subr.mxu0 0.0
        %730 = vmatpush1.msra.mxu0 0.0
        %731 = vmatprep.subr.mxu0 0.0
        %732 = vmatpush1.msra.mxu0 0.0
        %733 = vmatprep.subr.mxu0 0.0
        %734 = vmatpush1.msra.mxu0 0.0
        %735 = vmatprep.subr.mxu0 0.0
        %736 = vmatpush1.msra.mxu0 0.0
        %737 = vmatprep.subr.mxu0 0.0
        %738 = vmatpush1.msra.mxu0 0.0
        %739 = vmatprep.subr.mxu0 0.0
        %740 = vmatpush1.msra.mxu0 0.0
        %741 = vmatprep.subr.mxu0 0.0
        %742 = vmatpush1.msra.mxu0 0.0
        %743 = vmatprep.subr.mxu0 0.0
        %744 = vmatpush1.msra.mxu0 0.0
        %745 = vmatprep.subr.mxu0 0.0
        %746 = vmatpush1.msra.mxu0 0.0
        %747 = vmatprep.subr.mxu0 0.0
        %748 = vmatpush1.msra.mxu0 0.0
        %749 = vmatprep.mubr.f32.mxu0 0.0
        %750 = vmatmul.mubr.f32.gmra.mrb[0].mxu0 %v683
        %v751 = vpop.f32.mrb[0].mxu0
        %v752 = vadd.f32 %v447, %v751
        %v753 = vpop.f32.mrb[0].mxu0
        %754 = vdwg.mxu0
        %v756 = vrot.slane %v752, 6
        %v758 = vadd.f32 %v458, %v756
        %v759 = vxor.u32 %v758, 2147483648
        %v760 = vmul.f32 %v759, 1.442695
        %v761 = vpow.pop %v760
        %v762 = vadd.f32 %v761, 1.0
        %v763 = vrcp.pop %v762
        %v764 = vmul.f32 1.0, %v763
        %765 = vrot.lane.b32.xlu0 %v756, 64
        %v766 = vpop.permute.xlu0 %765
        %v768 = vmul.f32 %v764, %v766
        %770 = vrot.lane.b32.xlu0 %v768, 64
        %v771 = vpop.permute.xlu0 %770
        %v773 = vadd.f32 %v458, %v771
        %v774 = vtanh.pop %v773
        %v775 = vsub.f32 1.0, %v764
        %777 = vrot.lane.b32.xlu0 %v774, 96
        %v778 = vpop.permute.xlu0 %777
        %v780 = vmul.f32 %v775, %v778
        %v781 = vrot.slane %v673, 7
        %v783 = vmul.f32 %v764, %v781
        %v784 = vadd.f32 %v780, %v783
        %786 = vrot.lane.b32.xlu0 %v784, 96
        %v787 = vpop.permute.xlu0 %786
        %vm789 = vcmask 256002
        %790 = vst.msk [vmem:[#allocation3] sm:$0x4] %vm789, %v787
        %v791 = vrot.slane %v784, 2
        %792 = vrot.lane.b32.xlu0 %v791, 96
        %v793 = vpop.permute.xlu0 %792
        %v794 = vsel %vm459, %v793, 0
        %796 = vmatprep.subr.mxu0 0.0
        %797 = vmatpush1.msra.mxu0 %v443
        %798 = vmatprep.subr.mxu0 0.0
        %799 = vmatpush1.msra.mxu0 %v444
        %800 = vmatprep.subr.mxu0 0.0
        %801 = vmatpush1.msra.mxu0 %v445
        %802 = vmatprep.subr.mxu0 0.0
        %803 = vmatpush1.msra.mxu0 %v446
        %804 = vmatprep.subr.mxu0 0.0
        %805 = vmatpush1.msra.mxu0 0.0
        %806 = vmatprep.subr.mxu0 0.0
        %807 = vmatpush1.msra.mxu0 0.0
        %808 = vmatprep.subr.mxu0 0.0
        %809 = vmatpush1.msra.mxu0 0.0
        %810 = vmatprep.subr.mxu0 0.0
        %811 = vmatpush1.msra.mxu0 0.0
        %812 = vmatprep.subr.mxu0 0.0
        %813 = vmatpush1.msra.mxu0 0.0
        %814 = vmatprep.subr.mxu0 0.0
        %815 = vmatpush1.msra.mxu0 0.0
        %816 = vmatprep.subr.mxu0 0.0
        %817 = vmatpush1.msra.mxu0 0.0
        %818 = vmatprep.subr.mxu0 0.0
        %819 = vmatpush1.msra.mxu0 0.0
        %820 = vmatprep.subr.mxu0 0.0
        %821 = vmatpush1.msra.mxu0 0.0
        %822 = vmatprep.subr.mxu0 0.0
        %823 = vmatpush1.msra.mxu0 0.0
        %824 = vmatprep.subr.mxu0 0.0
        %825 = vmatpush1.msra.mxu0 0.0
        %826 = vmatprep.subr.mxu0 0.0
        %827 = vmatpush1.msra.mxu0 0.0
        %828 = vmatprep.subr.mxu0 0.0
        %829 = vmatpush1.msra.mxu0 0.0
        %830 = vmatprep.subr.mxu0 0.0
        %831 = vmatpush1.msra.mxu0 0.0
        %832 = vmatprep.subr.mxu0 0.0
        %833 = vmatpush1.msra.mxu0 0.0
        %834 = vmatprep.subr.mxu0 0.0
        %835 = vmatpush1.msra.mxu0 0.0
        %836 = vmatprep.subr.mxu0 0.0
        %837 = vmatpush1.msra.mxu0 0.0
        %838 = vmatprep.subr.mxu0 0.0
        %839 = vmatpush1.msra.mxu0 0.0
        %840 = vmatprep.subr.mxu0 0.0
        %841 = vmatpush1.msra.mxu0 0.0
        %842 = vmatprep.subr.mxu0 0.0
        %843 = vmatpush1.msra.mxu0 0.0
        %844 = vmatprep.subr.mxu0 0.0
        %845 = vmatpush1.msra.mxu0 0.0
        %846 = vmatprep.subr.mxu0 0.0
        %847 = vmatpush1.msra.mxu0 0.0
        %848 = vmatprep.subr.mxu0 0.0
        %849 = vmatpush1.msra.mxu0 0.0
        %850 = vmatprep.subr.mxu0 0.0
        %851 = vmatpush1.msra.mxu0 0.0
        %852 = vmatprep.subr.mxu0 0.0
        %853 = vmatpush1.msra.mxu0 0.0
        %854 = vmatprep.subr.mxu0 0.0
        %855 = vmatpush1.msra.mxu0 0.0
        %856 = vmatprep.subr.mxu0 0.0
        %857 = vmatpush1.msra.mxu0 0.0
        %858 = vmatprep.subr.mxu0 0.0
        %859 = vmatpush1.msra.mxu0 0.0
        %860 = vmatprep.mubr.f32.mxu0 0.0
        %861 = vmatmul.mubr.f32.gmra.mrb[0].mxu0 %v794
        %v862 = vpop.f32.mrb[0].mxu0
        %v863 = vadd.f32 %v447, %v862
        %v864 = vpop.f32.mrb[0].mxu0
        %865 = vdwg.mxu0
        %v867 = vrot.slane %v863, 5
        %v869 = vadd.f32 %v458, %v867
        %v870 = vxor.u32 %v869, 2147483648
        %v871 = vmul.f32 %v870, 1.442695
        %v872 = vpow.pop %v871
        %v873 = vadd.f32 %v872, 1.0
        %v874 = vrcp.pop %v873
        %v875 = vmul.f32 1.0, %v874
        %876 = vrot.lane.b32.xlu0 %v867, 64
        %v877 = vpop.permute.xlu0 %876
        %v879 = vmul.f32 %v875, %v877
        %881 = vrot.lane.b32.xlu0 %v879, 64
        %v882 = vpop.permute.xlu0 %881
        %v884 = vadd.f32 %v458, %v882
        %v885 = vtanh.pop %v884
        %v886 = vsub.f32 1.0, %v875
        %888 = vrot.lane.b32.xlu0 %v885, 96
        %v889 = vpop.permute.xlu0 %888
        %v891 = vmul.f32 %v886, %v889
        %v892 = vrot.slane %v784, 7
        %v894 = vmul.f32 %v875, %v892
        %v895 = vadd.f32 %v891, %v894
        %897 = vrot.lane.b32.xlu0 %v895, 96
        %v898 = vpop.permute.xlu0 %897
        %vm900 = vcmask 257027
        %901 = vst.msk [vmem:[#allocation3] sm:$0x8] %vm900, %v898
        %v902 = vrot.slane %v895, 3
        %903 = vrot.lane.b32.xlu0 %v902, 96
        %v904 = vpop.permute.xlu0 %903
        %v905 = vsel %vm459, %v904, 0
        %907 = vmatprep.subr.mxu0 0.0
        %908 = vmatpush1.msra.mxu0 %v443
        %909 = vmatprep.subr.mxu0 0.0
        %910 = vmatpush1.msra.mxu0 %v444
        %911 = vmatprep.subr.mxu0 0.0
        %912 = vmatpush1.msra.mxu0 %v445
        %913 = vmatprep.subr.mxu0 0.0
        %914 = vmatpush1.msra.mxu0 %v446
        %915 = vmatprep.subr.mxu0 0.0
        %916 = vmatpush1.msra.mxu0 0.0
        %917 = vmatprep.subr.mxu0 0.0
        %918 = vmatpush1.msra.mxu0 0.0
        %919 = vmatprep.subr.mxu0 0.0
        %920 = vmatpush1.msra.mxu0 0.0
        %921 = vmatprep.subr.mxu0 0.0
        %922 = vmatpush1.msra.mxu0 0.0
        %923 = vmatprep.subr.mxu0 0.0
        %924 = vmatpush1.msra.mxu0 0.0
        %925 = vmatprep.subr.mxu0 0.0
        %926 = vmatpush1.msra.mxu0 0.0
        %927 = vmatprep.subr.mxu0 0.0
        %928 = vmatpush1.msra.mxu0 0.0
        %929 = vmatprep.subr.mxu0 0.0
        %930 = vmatpush1.msra.mxu0 0.0
        %931 = vmatprep.subr.mxu0 0.0
        %932 = vmatpush1.msra.mxu0 0.0
        %933 = vmatprep.subr.mxu0 0.0
        %934 = vmatpush1.msra.mxu0 0.0
        %935 = vmatprep.subr.mxu0 0.0
        %936 = vmatpush1.msra.mxu0 0.0
        %937 = vmatprep.subr.mxu0 0.0
        %938 = vmatpush1.msra.mxu0 0.0
        %939 = vmatprep.subr.mxu0 0.0
        %940 = vmatpush1.msra.mxu0 0.0
        %941 = vmatprep.subr.mxu0 0.0
        %942 = vmatpush1.msra.mxu0 0.0
        %943 = vmatprep.subr.mxu0 0.0
        %944 = vmatpush1.msra.mxu0 0.0
        %945 = vmatprep.subr.mxu0 0.0
        %946 = vmatpush1.msra.mxu0 0.0
        %947 = vmatprep.subr.mxu0 0.0
        %948 = vmatpush1.msra.mxu0 0.0
        %949 = vmatprep.subr.mxu0 0.0
        %950 = vmatpush1.msra.mxu0 0.0
        %951 = vmatprep.subr.mxu0 0.0
        %952 = vmatpush1.msra.mxu0 0.0
        %953 = vmatprep.subr.mxu0 0.0
        %954 = vmatpush1.msra.mxu0 0.0
        %955 = vmatprep.subr.mxu0 0.0
        %956 = vmatpush1.msra.mxu0 0.0
        %957 = vmatprep.subr.mxu0 0.0
        %958 = vmatpush1.msra.mxu0 0.0
        %959 = vmatprep.subr.mxu0 0.0
        %960 = vmatpush1.msra.mxu0 0.0
        %961 = vmatprep.subr.mxu0 0.0
        %962 = vmatpush1.msra.mxu0 0.0
        %963 = vmatprep.subr.mxu0 0.0
        %964 = vmatpush1.msra.mxu0 0.0
        %965 = vmatprep.subr.mxu0 0.0
        %966 = vmatpush1.msra.mxu0 0.0
        %967 = vmatprep.subr.mxu0 0.0
        %968 = vmatpush1.msra.mxu0 0.0
        %969 = vmatprep.subr.mxu0 0.0
        %970 = vmatpush1.msra.mxu0 0.0
        %971 = vmatprep.mubr.f32.mxu0 0.0
        %972 = vmatmul.mubr.f32.gmra.mrb[0].mxu0 %v905
        %v973 = vpop.f32.mrb[0].mxu0
        %v974 = vadd.f32 %v447, %v973
        %v975 = vpop.f32.mrb[0].mxu0
        %976 = vdwg.mxu0
        %v978 = vrot.slane %v974, 4
        %v980 = vadd.f32 %v458, %v978
        %v981 = vxor.u32 %v980, 2147483648
        %v982 = vmul.f32 %v981, 1.442695
        %v983 = vpow.pop %v982
        %v984 = vadd.f32 %v983, 1.0
        %v985 = vrcp.pop %v984
        %v986 = vmul.f32 1.0, %v985
        %987 = vrot.lane.b32.xlu0 %v978, 64
        %v988 = vpop.permute.xlu0 %987
        %v990 = vmul.f32 %v986, %v988
        %992 = vrot.lane.b32.xlu0 %v990, 64
        %v993 = vpop.permute.xlu0 %992
        %v995 = vadd.f32 %v458, %v993
        %v996 = vtanh.pop %v995
        %v997 = vsub.f32 1.0, %v986
        %999 = vrot.lane.b32.xlu0 %v996, 96
        %v1000 = vpop.permute.xlu0 %999
        %v1002 = vmul.f32 %v997, %v1000
        %v1003 = vrot.slane %v895, 7
        %v1005 = vmul.f32 %v986, %v1003
        %v1006 = vadd.f32 %v1002, %v1005
        %1008 = vrot.lane.b32.xlu0 %v1006, 96
        %v1009 = vpop.permute.xlu0 %1008
        %vm1011 = vcmask 258052
        %1012 = vst.msk [vmem:[#allocation3] sm:$0x10] %vm1011, %v1009
        %v1013 = vrot.slane %v1006, 4
        %1014 = vrot.lane.b32.xlu0 %v1013, 96
        %v1015 = vpop.permute.xlu0 %1014
        %v1016 = vsel %vm459, %v1015, 0
        %1018 = vmatprep.subr.mxu0 0.0
        %1019 = vmatpush1.msra.mxu0 %v443
        %1020 = vmatprep.subr.mxu0 0.0
        %1021 = vmatpush1.msra.mxu0 %v444
        %1022 = vmatprep.subr.mxu0 0.0
        %1023 = vmatpush1.msra.mxu0 %v445
        %1024 = vmatprep.subr.mxu0 0.0
        %1025 = vmatpush1.msra.mxu0 %v446
        %1026 = vmatprep.subr.mxu0 0.0
        %1027 = vmatpush1.msra.mxu0 0.0
        %1028 = vmatprep.subr.mxu0 0.0
        %1029 = vmatpush1.msra.mxu0 0.0
        %1030 = vmatprep.subr.mxu0 0.0
        %1031 = vmatpush1.msra.mxu0 0.0
        %1032 = vmatprep.subr.mxu0 0.0
        %1033 = vmatpush1.msra.mxu0 0.0
        %1034 = vmatprep.subr.mxu0 0.0
        %1035 = vmatpush1.msra.mxu0 0.0
        %1036 = vmatprep.subr.mxu0 0.0
        %1037 = vmatpush1.msra.mxu0 0.0
        %1038 = vmatprep.subr.mxu0 0.0
        %1039 = vmatpush1.msra.mxu0 0.0
        %1040 = vmatprep.subr.mxu0 0.0
        %1041 = vmatpush1.msra.mxu0 0.0
        %1042 = vmatprep.subr.mxu0 0.0
        %1043 = vmatpush1.msra.mxu0 0.0
        %1044 = vmatprep.subr.mxu0 0.0
        %1045 = vmatpush1.msra.mxu0 0.0
        %1046 = vmatprep.subr.mxu0 0.0
        %1047 = vmatpush1.msra.mxu0 0.0
        %1048 = vmatprep.subr.mxu0 0.0
        %1049 = vmatpush1.msra.mxu0 0.0
        %1050 = vmatprep.subr.mxu0 0.0
        %1051 = vmatpush1.msra.mxu0 0.0
        %1052 = vmatprep.subr.mxu0 0.0
        %1053 = vmatpush1.msra.mxu0 0.0
        %1054 = vmatprep.subr.mxu0 0.0
        %1055 = vmatpush1.msra.mxu0 0.0
        %1056 = vmatprep.subr.mxu0 0.0
        %1057 = vmatpush1.msra.mxu0 0.0
        %1058 = vmatprep.subr.mxu0 0.0
        %1059 = vmatpush1.msra.mxu0 0.0
        %1060 = vmatprep.subr.mxu0 0.0
        %1061 = vmatpush1.msra.mxu0 0.0
        %1062 = vmatprep.subr.mxu0 0.0
        %1063 = vmatpush1.msra.mxu0 0.0
        %1064 = vmatprep.subr.mxu0 0.0
        %1065 = vmatpush1.msra.mxu0 0.0
        %1066 = vmatprep.subr.mxu0 0.0
        %1067 = vmatpush1.msra.mxu0 0.0
        %1068 = vmatprep.subr.mxu0 0.0
        %1069 = vmatpush1.msra.mxu0 0.0
        %1070 = vmatprep.subr.mxu0 0.0
        %1071 = vmatpush1.msra.mxu0 0.0
        %1072 = vmatprep.subr.mxu0 0.0
        %1073 = vmatpush1.msra.mxu0 0.0
        %1074 = vmatprep.subr.mxu0 0.0
        %1075 = vmatpush1.msra.mxu0 0.0
        %1076 = vmatprep.subr.mxu0 0.0
        %1077 = vmatpush1.msra.mxu0 0.0
        %1078 = vmatprep.subr.mxu0 0.0
        %1079 = vmatpush1.msra.mxu0 0.0
        %1080 = vmatprep.subr.mxu0 0.0
        %1081 = vmatpush1.msra.mxu0 0.0
        %1082 = vmatprep.mubr.f32.mxu0 0.0
        %1083 = vmatmul.mubr.f32.gmra.mrb[0].mxu0 %v1016
        %v1084 = vpop.f32.mrb[0].mxu0
        %v1085 = vadd.f32 %v447, %v1084
        %v1086 = vpop.f32.mrb[0].mxu0
        %1087 = vdwg.mxu0
        %v1089 = vrot.slane %v1085, 3
        %v1091 = vadd.f32 %v458, %v1089
        %v1092 = vxor.u32 %v1091, 2147483648
        %v1093 = vmul.f32 %v1092, 1.442695
        %v1094 = vpow.pop %v1093
        %v1095 = vadd.f32 %v1094, 1.0
        %v1096 = vrcp.pop %v1095
        %v1097 = vmul.f32 1.0, %v1096
        %1098 = vrot.lane.b32.xlu0 %v1089, 64
        %v1099 = vpop.permute.xlu0 %1098
        %v1101 = vmul.f32 %v1097, %v1099
        %1103 = vrot.lane.b32.xlu0 %v1101, 64
        %v1104 = vpop.permute.xlu0 %1103
        %v1106 = vadd.f32 %v458, %v1104
        %v1107 = vtanh.pop %v1106
        %v1108 = vsub.f32 1.0, %v1097
        %1110 = vrot.lane.b32.xlu0 %v1107, 96
        %v1111 = vpop.permute.xlu0 %1110
        %v1113 = vmul.f32 %v1108, %v1111
        %v1114 = vrot.slane %v1006, 7
        %v1116 = vmul.f32 %v1097, %v1114
        %v1117 = vadd.f32 %v1113, %v1116
        %1119 = vrot.lane.b32.xlu0 %v1117, 96
        %v1120 = vpop.permute.xlu0 %1119
        %vm1122 = vcmask 259077
        %1123 = vst.msk [vmem:[#allocation3] sm:$0x20] %vm1122, %v1120
        %v1124 = vrot.slane %v1117, 5
        %1125 = vrot.lane.b32.xlu0 %v1124, 96
        %v1126 = vpop.permute.xlu0 %1125
        %v1127 = vsel %vm459, %v1126, 0
        %1129 = vmatprep.subr.mxu0 0.0
        %1130 = vmatpush1.msra.mxu0 %v443
        %1131 = vmatprep.subr.mxu0 0.0
        %1132 = vmatpush1.msra.mxu0 %v444
        %1133 = vmatprep.subr.mxu0 0.0
        %1134 = vmatpush1.msra.mxu0 %v445
        %1135 = vmatprep.subr.mxu0 0.0
        %1136 = vmatpush1.msra.mxu0 %v446
        %1137 = vmatprep.subr.mxu0 0.0
        %1138 = vmatpush1.msra.mxu0 0.0
        %1139 = vmatprep.subr.mxu0 0.0
        %1140 = vmatpush1.msra.mxu0 0.0
        %1141 = vmatprep.subr.mxu0 0.0
        %1142 = vmatpush1.msra.mxu0 0.0
        %1143 = vmatprep.subr.mxu0 0.0
        %1144 = vmatpush1.msra.mxu0 0.0
        %1145 = vmatprep.subr.mxu0 0.0
        %1146 = vmatpush1.msra.mxu0 0.0
        %1147 = vmatprep.subr.mxu0 0.0
        %1148 = vmatpush1.msra.mxu0 0.0
        %1149 = vmatprep.subr.mxu0 0.0
        %1150 = vmatpush1.msra.mxu0 0.0
        %1151 = vmatprep.subr.mxu0 0.0
        %1152 = vmatpush1.msra.mxu0 0.0
        %1153 = vmatprep.subr.mxu0 0.0
        %1154 = vmatpush1.msra.mxu0 0.0
        %1155 = vmatprep.subr.mxu0 0.0
        %1156 = vmatpush1.msra.mxu0 0.0
        %1157 = vmatprep.subr.mxu0 0.0
        %1158 = vmatpush1.msra.mxu0 0.0
        %1159 = vmatprep.subr.mxu0 0.0
        %1160 = vmatpush1.msra.mxu0 0.0
        %1161 = vmatprep.subr.mxu0 0.0
        %1162 = vmatpush1.msra.mxu0 0.0
        %1163 = vmatprep.subr.mxu0 0.0
        %1164 = vmatpush1.msra.mxu0 0.0
        %1165 = vmatprep.subr.mxu0 0.0
        %1166 = vmatpush1.msra.mxu0 0.0
        %1167 = vmatprep.subr.mxu0 0.0
        %1168 = vmatpush1.msra.mxu0 0.0
        %1169 = vmatprep.subr.mxu0 0.0
        %1170 = vmatpush1.msra.mxu0 0.0
        %1171 = vmatprep.subr.mxu0 0.0
        %1172 = vmatpush1.msra.mxu0 0.0
        %1173 = vmatprep.subr.mxu0 0.0
        %1174 = vmatpush1.msra.mxu0 0.0
        %1175 = vmatprep.subr.mxu0 0.0
        %1176 = vmatpush1.msra.mxu0 0.0
        %1177 = vmatprep.subr.mxu0 0.0
        %1178 = vmatpush1.msra.mxu0 0.0
        %1179 = vmatprep.subr.mxu0 0.0
        %1180 = vmatpush1.msra.mxu0 0.0
        %1181 = vmatprep.subr.mxu0 0.0
        %1182 = vmatpush1.msra.mxu0 0.0
        %1183 = vmatprep.subr.mxu0 0.0
        %1184 = vmatpush1.msra.mxu0 0.0
        %1185 = vmatprep.subr.mxu0 0.0
        %1186 = vmatpush1.msra.mxu0 0.0
        %1187 = vmatprep.subr.mxu0 0.0
        %1188 = vmatpush1.msra.mxu0 0.0
        %1189 = vmatprep.subr.mxu0 0.0
        %1190 = vmatpush1.msra.mxu0 0.0
        %1191 = vmatprep.subr.mxu0 0.0
        %1192 = vmatpush1.msra.mxu0 0.0
        %1193 = vmatprep.mubr.f32.mxu0 0.0
        %1194 = vmatmul.mubr.f32.gmra.mrb[0].mxu0 %v1127
        %v1195 = vpop.f32.mrb[0].mxu0
        %v1196 = vadd.f32 %v447, %v1195
        %v1197 = vpop.f32.mrb[0].mxu0
        %1198 = vdwg.mxu0
        %v1200 = vrot.slane %v1196, 2
        %v1202 = vadd.f32 %v458, %v1200
        %v1203 = vxor.u32 %v1202, 2147483648
        %v1204 = vmul.f32 %v1203, 1.442695
        %v1205 = vpow.pop %v1204
        %v1206 = vadd.f32 %v1205, 1.0
        %v1207 = vrcp.pop %v1206
        %v1208 = vmul.f32 1.0, %v1207
        %1209 = vrot.lane.b32.xlu0 %v1200, 64
        %v1210 = vpop.permute.xlu0 %1209
        %v1212 = vmul.f32 %v1208, %v1210
        %1214 = vrot.lane.b32.xlu0 %v1212, 64
        %v1215 = vpop.permute.xlu0 %1214
        %v1217 = vadd.f32 %v458, %v1215
        %v1218 = vtanh.pop %v1217
        %v1219 = vsub.f32 1.0, %v1208
        %1221 = vrot.lane.b32.xlu0 %v1218, 96
        %v1222 = vpop.permute.xlu0 %1221
        %v1224 = vmul.f32 %v1219, %v1222
        %v1225 = vrot.slane %v1117, 7
        %v1227 = vmul.f32 %v1208, %v1225
        %v1228 = vadd.f32 %v1224, %v1227
        %1230 = vrot.lane.b32.xlu0 %v1228, 96
        %v1231 = vpop.permute.xlu0 %1230
        %vm1233 = vcmask 260102
        %1234 = vst.msk [vmem:[#allocation3] sm:$0x40] %vm1233, %v1231
        %v1235 = vrot.slane %v1228, 6
        %1236 = vrot.lane.b32.xlu0 %v1235, 96
        %v1237 = vpop.permute.xlu0 %1236
        %v1238 = vsel %vm459, %v1237, 0
        %1240 = vmatprep.subr.mxu0 0.0
        %1241 = vmatpush1.msra.mxu0 %v443
        %1242 = vmatprep.subr.mxu0 0.0
        %1243 = vmatpush1.msra.mxu0 %v444
        %1244 = vmatprep.subr.mxu0 0.0
        %1245 = vmatpush1.msra.mxu0 %v445
        %1246 = vmatprep.subr.mxu0 0.0
        %1247 = vmatpush1.msra.mxu0 %v446
        %1248 = vmatprep.subr.mxu0 0.0
        %1249 = vmatpush1.msra.mxu0 0.0
        %1250 = vmatprep.subr.mxu0 0.0
        %1251 = vmatpush1.msra.mxu0 0.0
        %1252 = vmatprep.subr.mxu0 0.0
        %1253 = vmatpush1.msra.mxu0 0.0
        %1254 = vmatprep.subr.mxu0 0.0
        %1255 = vmatpush1.msra.mxu0 0.0
        %1256 = vmatprep.subr.mxu0 0.0
        %1257 = vmatpush1.msra.mxu0 0.0
        %1258 = vmatprep.subr.mxu0 0.0
        %1259 = vmatpush1.msra.mxu0 0.0
        %1260 = vmatprep.subr.mxu0 0.0
        %1261 = vmatpush1.msra.mxu0 0.0
        %1262 = vmatprep.subr.mxu0 0.0
        %1263 = vmatpush1.msra.mxu0 0.0
        %1264 = vmatprep.subr.mxu0 0.0
        %1265 = vmatpush1.msra.mxu0 0.0
        %1266 = vmatprep.subr.mxu0 0.0
        %1267 = vmatpush1.msra.mxu0 0.0
        %1268 = vmatprep.subr.mxu0 0.0
        %1269 = vmatpush1.msra.mxu0 0.0
        %1270 = vmatprep.subr.mxu0 0.0
        %1271 = vmatpush1.msra.mxu0 0.0
        %1272 = vmatprep.subr.mxu0 0.0
        %1273 = vmatpush1.msra.mxu0 0.0
        %1274 = vmatprep.subr.mxu0 0.0
        %1275 = vmatpush1.msra.mxu0 0.0
        %1276 = vmatprep.subr.mxu0 0.0
        %1277 = vmatpush1.msra.mxu0 0.0
        %1278 = vmatprep.subr.mxu0 0.0
        %1279 = vmatpush1.msra.mxu0 0.0
        %1280 = vmatprep.subr.mxu0 0.0
        %1281 = vmatpush1.msra.mxu0 0.0
        %1282 = vmatprep.subr.mxu0 0.0
        %1283 = vmatpush1.msra.mxu0 0.0
        %1284 = vmatprep.subr.mxu0 0.0
        %1285 = vmatpush1.msra.mxu0 0.0
        %1286 = vmatprep.subr.mxu0 0.0
        %1287 = vmatpush1.msra.mxu0 0.0
        %1288 = vmatprep.subr.mxu0 0.0
        %1289 = vmatpush1.msra.mxu0 0.0
        %1290 = vmatprep.subr.mxu0 0.0
        %1291 = vmatpush1.msra.mxu0 0.0
        %1292 = vmatprep.subr.mxu0 0.0
        %1293 = vmatpush1.msra.mxu0 0.0
        %1294 = vmatprep.subr.mxu0 0.0
        %1295 = vmatpush1.msra.mxu0 0.0
        %1296 = vmatprep.subr.mxu0 0.0
        %1297 = vmatpush1.msra.mxu0 0.0
        %1298 = vmatprep.subr.mxu0 0.0
        %1299 = vmatpush1.msra.mxu0 0.0
        %1300 = vmatprep.subr.mxu0 0.0
        %1301 = vmatpush1.msra.mxu0 0.0
        %1302 = vmatprep.subr.mxu0 0.0
        %1303 = vmatpush1.msra.mxu0 0.0
        %1304 = vmatprep.mubr.f32.mxu0 0.0
        %1305 = vmatmul.mubr.f32.gmra.mrb[0].mxu0 %v1238
        %v1306 = vpop.f32.mrb[0].mxu0
        %v1307 = vadd.f32 %v447, %v1306
        %v1308 = vpop.f32.mrb[0].mxu0
        %1309 = vdwg.mxu0
        %v1311 = vrot.slane %v1307, 1
        %v1313 = vadd.f32 %v458, %v1311
        %v1314 = vxor.u32 %v1313, 2147483648
        %v1315 = vmul.f32 %v1314, 1.442695
        %v1316 = vpow.pop %v1315
        %v1317 = vadd.f32 %v1316, 1.0
        %v1318 = vrcp.pop %v1317
        %v1319 = vmul.f32 1.0, %v1318
        %1320 = vrot.lane.b32.xlu0 %v1311, 64
        %v1321 = vpop.permute.xlu0 %1320
        %v1323 = vmul.f32 %v1319, %v1321
        %1325 = vrot.lane.b32.xlu0 %v1323, 64
        %v1326 = vpop.permute.xlu0 %1325
        %v1328 = vadd.f32 %v458, %v1326
        %v1329 = vtanh.pop %v1328
        %v1330 = vsub.f32 1.0, %v1319
        %1332 = vrot.lane.b32.xlu0 %v1329, 96
        %v1333 = vpop.permute.xlu0 %1332
        %v1335 = vmul.f32 %v1330, %v1333
        %v1336 = vrot.slane %v1228, 7
        %v1338 = vmul.f32 %v1319, %v1336
        %v1339 = vadd.f32 %v1335, %v1338
        %1341 = vrot.lane.b32.xlu0 %v1339, 96
        %v1342 = vpop.permute.xlu0 %1341
        %vm1344 = vcmask 261127
        %1345 = vst.msk [vmem:[#allocation3] sm:$0x80] %vm1344, %v1342
        %v1346 = vld [vmem:[#allocation3] sm:$0xff]
        %v1348 = vlaneseq
        %v1349 = vshrl.u32 %v1348, 7
        %v1350 = vsub.s32 0, %v1349
        %v1351 = vrot.slane %v448, %v1350
        %v1353 = vmul.f32 %v1346, %v1351
        %v1354 = vsel %vm459, %v1353, 0.0
        %1355 = vadd.xlane.f32.xlu0 %v1354
        %v1356 = vpop.xlane.xlu0 %1355
        %v1358 = vlaneseq
        %v1359 = vshrl.u32 %v1358, 7
        %v1360 = vsub.s32 0, %v1359
        %v1361 = vrot.slane %v449, %v1360
        %v1363 = vadd.f32 %v1356, %v1361
        %s1364 = sadd.s32 %s455, 0
        %v1365 = vstv %s1364
        %vm1366 = vcmp.eq.s32.totalorder %v454, %v1365
        %1368 = vset.pattern.permute.xlu0 0
        %1369 = vperm.xlu0 %1368, %v1363
        %v1370 = vpop.permute.xlu0 %1369
        %v1372 = vsel %vm1366, %v1370, 0.0
        %v1373 = vrot.slane %v1372, 4
        %v1374 = vadd.f32 %v1372, %v1373
        %v1375 = vrot.slane %v1374, 2
        %v1376 = vadd.f32 %v1374, %v1375
        %v1377 = vrot.slane %v1376, 1
        %v1378 = vadd.f32 %v1376, %v1377
        %v1379 = vadd.f32 %v457, %v1378
        %1380 = vst.msk [vmem:[#allocation4 - $0x7] sm:$0x80] %vm1344, %v1342
        %1381 = vst [vmem:[#allocation5] sm:$0x1] %v1379
        %p1382 = scmp.eq.s32.totalorder %s30, 2
        // Predicated region
        $region69: #{tpu_custom_call.1} parent=51 // pred_check
          %p1383 = pneg %p1382
        $region70: #{tpu_custom_call.1} parent=51 // pred_check_branch
          %1385 = sbr.rel (%p1383) target = $region72
        $region71: #{tpu_custom_call.1} parent=51 // pred_region
          %s1386 = sld [smem:[#allocation7]]
          %v1387 = vstv %s1386
          %vm1388 = vcmp.lt.s32.totalorder %v451, %v1387
          %v1389 = vsel %vm1388, %v1379, 1e+30
          %v1390 = vsel %vm1388, %v1379, 0.0
          %v1391 = vsub.f32 0.0, %v1390
          %v1392 = vmul.f32 %v1391, 1.442695
          %v1393 = vpow.pop %v1392
          %vm1394 = vcmp.eq.s32.totalorder %v453, 0
          %v1395 = vmul.f32 %v1390, %v1393
          %v1396 = vlaneseq
          %v1397 = vshrl.u32 %v1396, 7
          %v1398 = vsub.s32 0, %v1397
          %v1399 = vrot.slane %v1395, %v1398
          %v1400 = vlaneseq
          %v1401 = vshrl.u32 %v1400, 7
          %v1402 = vsub.s32 0, %v1401
          %v1403 = vrot.slane %v1393, %v1402
          %v1404 = vsel %vm1394, %v1399, %v1403
          %v1405 = vsel %vm1388, 1, 0
          %vm1406 = vcmp.eq.s32.totalorder %v1405, 1
          %v1407 = vsel %vm1406, %v1404, 0.0
          %1408 = vrot.lane.b32.xlu0 %v1407, 127
          %v1409 = vpop.permute.xlu0 %1408
          %v1410 = vadd.f32 %v1407, %v1409
          %1411 = vrot.lane.b32.xlu0 %v1407, 126
          %v1412 = vpop.permute.xlu0 %1411
          %v1413 = vadd.f32 %v1410, %v1412
          %1414 = vrot.lane.b32.xlu0 %v1407, 125
          %v1415 = vpop.permute.xlu0 %1414
          %v1416 = vadd.f32 %v1413, %v1415
          %1417 = vrot.lane.b32.xlu0 %v1407, 124
          %v1418 = vpop.permute.xlu0 %1417
          %v1419 = vadd.f32 %v1416, %v1418
          %1420 = vrot.lane.b32.xlu0 %v1407, 123
          %v1421 = vpop.permute.xlu0 %1420
          %v1422 = vadd.f32 %v1419, %v1421
          %1423 = vrot.lane.b32.xlu0 %v1407, 122
          %v1424 = vpop.permute.xlu0 %1423
          %v1425 = vadd.f32 %v1422, %v1424
          %1426 = vrot.lane.b32.xlu0 %v1407, 121
          %v1427 = vpop.permute.xlu0 %1426
          %v1428 = vadd.f32 %v1425, %v1427
          %1429 = vrot.lane.b32.xlu0 %v1407, 120
          %v1430 = vpop.permute.xlu0 %1429
          %v1431 = vadd.f32 %v1428, %v1430
          %1432 = vrot.lane.b32.xlu0 %v1407, 119
          %v1433 = vpop.permute.xlu0 %1432
          %v1434 = vadd.f32 %v1431, %v1433
          %1435 = vrot.lane.b32.xlu0 %v1407, 118
          %v1436 = vpop.permute.xlu0 %1435
          %v1437 = vadd.f32 %v1434, %v1436
          %1438 = vrot.lane.b32.xlu0 %v1407, 117
          %v1439 = vpop.permute.xlu0 %1438
          %v1440 = vadd.f32 %v1437, %v1439
          %1441 = vrot.lane.b32.xlu0 %v1389, 1
          %v1442 = vpop.permute.xlu0 %1441
          %v1443 = vmin.f32 %v1389, %v1442
          %1444 = vrot.lane.b32.xlu0 %v1389, 2
          %v1445 = vpop.permute.xlu0 %1444
          %v1446 = vmin.f32 %v1443, %v1445
          %1447 = vrot.lane.b32.xlu0 %v1389, 3
          %v1448 = vpop.permute.xlu0 %1447
          %v1449 = vmin.f32 %v1446, %v1448
          %1450 = vrot.lane.b32.xlu0 %v1389, 4
          %v1451 = vpop.permute.xlu0 %1450
          %v1452 = vmin.f32 %v1449, %v1451
          %1453 = vrot.lane.b32.xlu0 %v1389, 5
          %v1454 = vpop.permute.xlu0 %1453
          %v1455 = vmin.f32 %v1452, %v1454
          %1456 = vrot.lane.b32.xlu0 %v1389, 6
          %v1457 = vpop.permute.xlu0 %1456
          %v1458 = vmin.f32 %v1455, %v1457
          %1459 = vrot.lane.b32.xlu0 %v1389, 7
          %v1460 = vpop.permute.xlu0 %1459
          %v1461 = vmin.f32 %v1458, %v1460
          %1462 = vrot.lane.b32.xlu0 %v1389, 8
          %v1463 = vpop.permute.xlu0 %1462
          %v1464 = vmin.f32 %v1461, %v1463
          %1465 = vrot.lane.b32.xlu0 %v1389, 9
          %v1466 = vpop.permute.xlu0 %1465
          %v1467 = vmin.f32 %v1464, %v1466
          %1468 = vrot.lane.b32.xlu0 %v1389, 10
          %v1469 = vpop.permute.xlu0 %1468
          %v1470 = vmin.f32 %v1467, %v1469
          %1471 = vrot.lane.b32.xlu0 %v1389, 11
          %v1472 = vpop.permute.xlu0 %1471
          %v1473 = vmin.f32 %v1470, %v1472
          %v1474 = vmax.f32 %v1440, 1e-30
          %v1476 = vrot.slane %v1474, 1
          %v1478 = vrcp.pop %v1476
          %v1479 = vmul.f32 %v1440, %v1478
          %v1480 = vmul.f32 %v1479, 0.5
          %v1481 = vmul.f32 %v1473, 0.5
          %v1482 = vadd.f32 %v1480, %v1481
          %v1483 = vsel %vm1388, %v1482, 0.0
          %vm1484 = vcmask 1040384
          %v1485 = vsel %vm1484, %v1483, 0.0
          %1486 = vadd.xlane.f32.xlu0 %v1485
          %v1487 = vpop.xlane.xlu0 %1486
          %v1488 = vld [vmem:[#allocation9] sm:$0x1]
          %v1489 = vmul.f32 %v1487, %v1488
          %vm1490 = vcmask 0
          %1491 = vst.msk [vmem:[#allocation16] sm:$0x1] %vm1490, %v1489
        $region72: #{tpu_custom_call.1} parent=51 // pred_fallthru
          _
        // Predicated region
        $region73: #{tpu_custom_call.1} parent=51 // pred_check
          %p1492 = pneg %p216
        $region74: #{tpu_custom_call.1} parent=51 // pred_check_branch
          %1494 = sbr.rel (%p1492) target = $region76
        $region75: #{tpu_custom_call.1} parent=51 // pred_region
          %s1496 = ssub.s32 16, 16
          %1497 = vsyncadd [#allocation12], %s1496
          %s1499 = sshll.u32 [#allocation16], 4
          %s1500 = int_to_ptr.vmem [resolvable:$true] %s1499
          %1502 = dma.vmem_to_hbm [thread:$0]  %s1500, 16, %s9, [#allocation12]
        $region76: #{tpu_custom_call.1} parent=51 // pred_fallthru
          _
        // Predicated region
        $region77: #{tpu_custom_call.1} parent=51 // pred_check
          %p1503 = pneg %p216
        $region78: #{tpu_custom_call.1} parent=51 // pred_check_branch
          %1505 = sbr.rel (%p1503) target = $region80
        $region79: #{tpu_custom_call.1} parent=51 // pred_region
          %1506 = dma.done [#allocation12], 16
        $region80: #{tpu_custom_call.1} parent=51 // pred_fallthru
          _
      $region52: #{tpu_custom_call.1} parent=5 // pred_fallthru
        _
      %p1507 = scmp.le.s32.totalorder 2, %s25
      // Predicated region
      $region81: #{tpu_custom_call.1} parent=5 // pred_check
        %p1508 = pneg %p1507
      $region82: #{tpu_custom_call.1} parent=5 // pred_check_branch
        %1510 = sbr.rel (%p1508) target = $region84
      $region83: #{tpu_custom_call.1} parent=5 // pred_region
        %s1511 = ssub.s32 %s25, 2
      $region84: #{tpu_custom_call.1} parent=5 // pred_fallthru
        _
    $region6: #{tpu_custom_call.1} parent=1 // loop_footer
      %s29 = sadd.s32 1, %s25
    $region7: #{tpu_custom_call.1} parent=1 // loop_footer_branch
      %24 = sbr.rel target = $region3
    $region8: #{tpu_custom_call.1} parent=1 // loop_exit
      _
    %1512 = vsyncpa [#allocation11], 1
    %s1513 = scalar_lea.sflag [#allocation11], 1
    %1514 = vsyncpa %s1513, 1
    %1515 = vsyncpa [#allocation14], 1
    %1516 = vsyncpa [#allocation12], 1
    %s1517 = scalar_lea.sflag [#allocation12], 1
    %1518 = vsyncpa %s1517, 1

</llo_original>
